<compile_context>
chip_gen: v7x
topology: tpu7x:2x2x1
jax: 0.10.0
libtpu: 0.0.40
codegen_flags: <defaults>
</compile_context>

<pallas_src>
import functools

import numpy as np
import jax
import jax.numpy as jnp
from jax.experimental import pallas as pl
from jax.experimental.pallas import tpu as pltpu

BN_EPS = 1e-5
HIDDEN_DIMS = [128, 256, 512, 256, 128]
FEAT_LANES = 8          # narrow lane width for x / raw / log_S / output tiles
VEC_ROWS = 16           # bias/vector slab rows
VEC_COLS = 512          # bias/vector slab lanes (widest bias = 512)
TB_LARGE = 1024         # large-batch tile (rows per grid step)
FLOPS_PER_ROW = 1_183_232   # 2 * total MACs per row (both MLPs)


# ----------------------------- Pallas kernel --------------------------------
def nkat_kernel(x_ref, vec_ref,
                w2, w3, w4, w5, w6,
                c2w, c3w, c4w,
                out_ref, *, bf16_epi):
    x = x_ref[...]                        # (TB, 8) f32, N in lane 0
    n_col = x[:, 0:1]                     # (TB, 1)

    # ---- vector slab (f32): one DMA holds every 1-row parameter -------------
    w1_row = vec_ref[0:1, 0:128]          # folded Linear(1,128) weight row
    b1 = vec_ref[1:2, 0:128]
    b2 = vec_ref[2:3, 0:256]
    b3 = vec_ref[3:4, 0:512]
    b4 = vec_ref[4:5, 0:256]
    b5 = vec_ref[5:6, 0:128]
    b6 = vec_ref[6:7, 0:FEAT_LANES]
    c1b = vec_ref[7:8, 0:256]
    c2b = vec_ref[8:9, 0:512]
    c3b = vec_ref[9:10, 0:256]
    c4b = vec_ref[10:11, 0:FEAT_LANES]
    c1w0 = vec_ref[11:12, 0:256]          # rows of the 4x256 convergence layer 1
    c1w1 = vec_ref[12:13, 0:256]
    c1w2 = vec_ref[13:14, 0:256]
    c1w3 = vec_ref[14:15, 0:256]

    def dot_relu(h, w_ref, b):
        # MXU in bf16, f32 accumulate.
        acc = jnp.dot(h.astype(jnp.bfloat16), w_ref[...],
                      preferred_element_type=jnp.float32)
        if bf16_epi:
            # v6e/v7x: packed-bf16 VALU epilogue; output feeds the next dot
            # without another cast.
            z = acc.astype(jnp.bfloat16) + b.astype(jnp.bfloat16)
        else:
            # v5e/v4: keep the epilogue in f32 (no bf16 VPU path).
            z = acc + b
        return jnp.maximum(z, 0.0)

    # parameter_net: layer 1 is an outer product -> VPU broadcast, no MXU.
    # BN(eval) already folded into weights/biases; Dropout = identity (eval).
    h = jnp.maximum(n_col * w1_row + b1, 0.0)                       # (TB, 128)
    h = dot_relu(h, w2, b2)                                         # (TB, 256)
    h = dot_relu(h, w3, b3)                                         # (TB, 512)
    h = dot_relu(h, w4, b4)                                         # (TB, 256)
    h = dot_relu(h, w5, b5)                                         # (TB, 128)
    # final Linear(128,3): tiny, kept in f32 for accuracy.
    raw = jnp.dot(h.astype(jnp.float32), w6[...],
                  preferred_element_type=jnp.float32) + b6          # (TB, 8), cols 0..2 valid

    gamma = jax.nn.sigmoid(raw[:, 0:1]) * 0.5 + 0.1                 # (TB, 1)
    delta = jax.nn.sigmoid(raw[:, 1:2]) * 0.08 + 0.01               # (TB, 1)
    t_c = jax.nn.softplus(raw[:, 2:3]) + 10.0                       # (TB, 1)

    # convergence_net layer 1 (4 -> 256): VPU broadcast-MAC, no K=8 MXU push,
    # no sparse-lane `feat` intermediate.
    h = jnp.maximum(n_col * c1w0 + gamma * c1w1 + delta * c1w2 + t_c * c1w3 + c1b,
                    0.0)                                            # (TB, 256)
    h = dot_relu(h, c2w, c2b)                                       # (TB, 512)
    h = dot_relu(h, c3w, c3b)                                       # (TB, 256)
    # final Linear(256,1): tiny, kept in f32 so exp(log_S) is not fed
    # bf16-rounded logits.
    log_s = jnp.dot(h.astype(jnp.float32), c4w[...],
                    preferred_element_type=jnp.float32) + c4b       # (TB, 8), col 0 valid
    s = jnp.exp(log_s[:, 0:1])                                      # (TB, 1)

    lane = jax.lax.broadcasted_iota(jnp.int32, x.shape, 1)          # (TB, 8)
    out_ref[...] = (jnp.where(lane == 0, s, 0.0)
                    + jnp.where(lane == 1, gamma, 0.0)
                    + jnp.where(lane == 2, delta, 0.0)
                    + jnp.where(lane == 3, t_c, 0.0))


# ------------------------- parameter construction ---------------------------
def _uniform(key, shape, fan_in):
    bound = 1.0 / np.sqrt(fan_in)
    return jax.random.uniform(key, shape, jnp.float32, -bound, bound)


def init_params(key):
    """Deterministic init mimicking the PyTorch module's layer shapes (eval mode)."""
    params = {}
    dims = [1] + HIDDEN_DIMS
    keys = jax.random.split(key, 64)
    ki = 0
    pnet = []
    for i in range(len(HIDDEN_DIMS)):
        din, dout = dims[i], dims[i + 1]
        w = _uniform(keys[ki], (din, dout), din); ki += 1
        b = _uniform(keys[ki], (dout,), din); ki += 1
        bn_w = jax.random.uniform(keys[ki], (dout,), jnp.float32, 0.9, 1.1); ki += 1
        bn_b = jax.random.uniform(keys[ki], (dout,), jnp.float32, -0.05, 0.05); ki += 1
        rm = jax.random.uniform(keys[ki], (dout,), jnp.float32, -0.05, 0.05); ki += 1
        rv = jax.random.uniform(keys[ki], (dout,), jnp.float32, 0.8, 1.2); ki += 1
        pnet.append((w, b, bn_w, bn_b, rm, rv))
    params["pnet"] = pnet
    params["pfinal"] = (_uniform(keys[ki], (128, 3), 128),
                        _uniform(keys[ki + 1], (3,), 128))
    ki += 2
    cdims = [(4, 256), (256, 512), (512, 256), (256, 1)]
    cnet = []
    for din, dout in cdims:
        w = _uniform(keys[ki], (din, dout), din); ki += 1
        b = _uniform(keys[ki], (dout,), din); ki += 1
        cnet.append((w, b))
    params["cnet"] = cnet
    return params


def _pad_cols(w, cols):
    out = jnp.zeros((w.shape[0], cols), w.dtype)
    return out.at[:, :w.shape[1]].set(w)


def pack_params(params):
    """Fold BN into W/b, pack all row-vectors into one f32 slab.

    Big matmul weights -> bf16; the tiny final layers (w6, c4w) stay f32.
    """
    folded_w, folded_b = [], []
    for (w, b, bn_w, bn_b, rm, rv) in params["pnet"]:
        scale = bn_w / jnp.sqrt(rv + BN_EPS)
        shift = bn_b - rm * scale
        folded_w.append(w * scale[None, :])
        folded_b.append(b * scale + shift)
    w6, b6 = params["pfinal"]
    (c1w, c1b), (c2w, c2b), (c3w, c3b), (c4w, c4b) = params["cnet"]

    slab = jnp.zeros((VEC_ROWS, VEC_COLS), jnp.float32)
    rows = [folded_w[0][0],   # row 0 : folded Linear(1,128) weight (128,)
            folded_b[0],      # row 1 : b1 (128,)
            folded_b[1],      # row 2 : b2 (256,)
            folded_b[2],      # row 3 : b3 (512,)
            folded_b[3],      # row 4 : b4 (256,)
            folded_b[4],      # row 5 : b5 (128,)
            b6,               # row 6 : b6 (3,)
            c1b,              # row 7 : (256,)
            c2b,              # row 8 : (512,)
            c3b,              # row 9 : (256,)
            c4b,              # row 10: (1,)
            c1w[0],           # rows 11-14: convergence layer-1 weight rows (256,)
            c1w[1],
            c1w[2],
            c1w[3]]
    for r, v in enumerate(rows):
        slab = slab.at[r, :v.shape[0]].set(v)

    bf16 = lambda a: a.astype(jnp.bfloat16)
    weights = [bf16(folded_w[1]),                       # w2  (128, 256) bf16
               bf16(folded_w[2]),                       # w3  (256, 512) bf16
               bf16(folded_w[3]),                       # w4  (512, 256) bf16
               bf16(folded_w[4]),                       # w5  (256, 128) bf16
               _pad_cols(w6, FEAT_LANES).astype(jnp.float32),   # w6  (128, 8) f32
               bf16(c2w),                               # c2w (256, 512) bf16
               bf16(c3w),                               # c3w (512, 256) bf16
               _pad_cols(c4w, FEAT_LANES).astype(jnp.float32)]  # c4w (256, 8) f32
    return slab, weights


# ------------------------------- wrapper -------------------------------------
def _round_up(n, m):
    return -(-n // m) * m


def _choose_tb(B):
    """Rows per grid step (multiple of 8 sublanes)."""
    if B <= 512:
        return max(8, _round_up(B, 8))          # tiny batch: launch/DMA dominated anyway
    if B <= 2 * TB_LARGE:
        return _round_up(-(-B // 2), 8)         # two equal tiles -> both v7x TCs busy
    return TB_LARGE                             # large batch: 1024-row tiles


def _use_bf16_epilogue():
    """bf16 bias+ReLU epilogue only where the VPU has a packed-bf16 path."""
    try:
        kind = jax.devices()[0].device_kind.lower()
    except Exception:
        return False
    return ("v6" in kind) or ("v7" in kind)


def nkat_forward(N, params, tb=None):
    N = N.astype(jnp.float32)
    B = N.shape[0]
    if tb is None:
        tb = _choose_tb(B)
    B_pad = _round_up(B, tb)

    # Pad rows >= B with a benign in-domain value (N = 1) so exp() on the
    # padded region stays finite; padded rows are sliced off below.
    x = jnp.zeros((B_pad, FEAT_LANES), jnp.float32)
    x = x.at[:, 0].set(1.0)
    x = x.at[:B, 0].set(N)

    vec_slab, weights = pack_params(params)
    bf16_epi = _use_bf16_epilogue()

    grid = (B_pad // tb,)
    io_spec = pl.BlockSpec((tb, FEAT_LANES), lambda i: (i, 0))
    const_spec = lambda shp: pl.BlockSpec(shp, lambda i: (0, 0))
    in_specs = ([io_spec, const_spec(vec_slab.shape)]
                + [const_spec(w.shape) for w in weights])

    weight_bytes = int(sum(int(np.prod(w.shape)) * w.dtype.itemsize for w in weights)
                       + vec_slab.size * 4)
    cost = pl.CostEstimate(
        flops=int(FLOPS_PER_ROW) * int(B_pad),
        transcendentals=5 * int(B_pad),                    # 2 sigmoid + softplus(2) + exp
        bytes_accessed=weight_bytes + 2 * int(B_pad) * FEAT_LANES * 4)

    out = pl.pallas_call(
        functools.partial(nkat_kernel, bf16_epi=bf16_epi),
        out_shape=jax.ShapeDtypeStruct((B_pad, FEAT_LANES), jnp.float32),
        grid=grid,
        in_specs=in_specs,
        out_specs=io_spec,
        compiler_params=pltpu.CompilerParams(
            dimension_semantics=("parallel",),
            vmem_limit_bytes=48 * 1024 * 1024),
        cost_estimate=cost,
    )(x, vec_slab, *weights)

    S = out[:B, 0]
    gamma = out[:B, 1]
    delta = out[:B, 2]
    t_c = out[:B, 3]
    return S, gamma, delta, t_c


# -------------------------- pure-JAX reference --------------------------------
def nkat_reference(N, params):
    N = N.astype(jnp.float32)
    h = N[:, None]
    for (w, b, bn_w, bn_b, rm, rv) in params["pnet"]:
        z = h @ w + b
        z = (z - rm) / jnp.sqrt(rv + BN_EPS) * bn_w + bn_b
        h = jnp.maximum(z, 0.0)
    w6, b6 = params["pfinal"]
    raw = h @ w6 + b6
    gamma = jax.nn.sigmoid(raw[:, 0]) * 0.5 + 0.1
    delta = jax.nn.sigmoid(raw[:, 1]) * 0.08 + 0.01
    t_c = jax.nn.softplus(raw[:, 2]) + 10.0
    feat = jnp.stack([N, gamma, delta, t_c], axis=1)
    h = feat
    for i, (w, b) in enumerate(params["cnet"]):
        h = h @ w + b
        if i < len(params["cnet"]) - 1:
            h = jnp.maximum(h, 0.0)
    S = jnp.exp(jnp.squeeze(h, -1))
    return S, gamma, delta, t_c


if __name__ == "__main__":
    key = jax.random.PRNGKey(0)
    pkey, nkey1, nkey2 = jax.random.split(key, 3)
    params = init_params(pkey)

    def check(N):
        S, gamma, delta, t_c = nkat_forward(N, params)
        jax.block_until_ready((S, gamma, delta, t_c))
        S_r, g_r, d_r, t_r = nkat_reference(N, params)
        # Hidden matmuls run in bf16 on the MXU (f32 accumulate), so tolerances
        # are bf16-appropriate; the f32 final layers keep S reasonably tight.
        np.testing.assert_allclose(np.asarray(S), np.asarray(S_r), rtol=1e-1, atol=1e-3)
        np.testing.assert_allclose(np.asarray(gamma), np.asarray(g_r), rtol=3e-2, atol=5e-3)
        np.testing.assert_allclose(np.asarray(delta), np.asarray(d_r), rtol=3e-2, atol=2e-3)
        np.testing.assert_allclose(np.asarray(t_c), np.asarray(t_r), rtol=1e-2, atol=2e-2)

    # single-tile path (B = 16) and multi-tile + padded path (B = 1000, grid = 2)
    check(jax.random.uniform(nkey1, (16,), jnp.float32, 1.0, 50.0))
    check(jax.random.uniform(nkey2, (1000,), jnp.float32, 1.0, 50.0))

    print("KERNEL_OK")
</pallas_src>

<mosaic_0001>
module attributes {stable_mosaic.version = 11 : i64} {
  func.func @nkat_kernel(%arg0: i32, %arg1: memref<16x8xf32, #tpu.memory_space<vmem>>, %arg2: memref<16x512xf32, #tpu.memory_space<vmem>>, %arg3: memref<128x256xbf16, #tpu.memory_space<vmem>>, %arg4: memref<256x512xbf16, #tpu.memory_space<vmem>>, %arg5: memref<512x256xbf16, #tpu.memory_space<vmem>>, %arg6: memref<256x128xbf16, #tpu.memory_space<vmem>>, %arg7: memref<128x8xf32, #tpu.memory_space<vmem>>, %arg8: memref<256x512xbf16, #tpu.memory_space<vmem>>, %arg9: memref<512x256xbf16, #tpu.memory_space<vmem>>, %arg10: memref<256x8xf32, #tpu.memory_space<vmem>>, %arg11: memref<16x8xf32, #tpu.memory_space<vmem>>) attributes {dimension_semantics = [#tpu.dimension_semantics<parallel>], iteration_bounds = array<i64: 1>, scalar_prefetch = 0 : i64, scratch_operands = 0 : i64, tpu.core_type = #tpu.core_type<tc>, window_params = [{transform_indices = @transform_0, window_bounds = array<i64: 16, 8>}, {pipeline_mode = #tpu.pipeline_mode<synchronous>, transform_indices = @transform_1, window_bounds = array<i64: 16, 512>}, {pipeline_mode = #tpu.pipeline_mode<synchronous>, transform_indices = @transform_2, window_bounds = array<i64: 128, 256>}, {pipeline_mode = #tpu.pipeline_mode<synchronous>, transform_indices = @transform_3, window_bounds = array<i64: 256, 512>}, {pipeline_mode = #tpu.pipeline_mode<synchronous>, transform_indices = @transform_4, window_bounds = array<i64: 512, 256>}, {pipeline_mode = #tpu.pipeline_mode<synchronous>, transform_indices = @transform_5, window_bounds = array<i64: 256, 128>}, {pipeline_mode = #tpu.pipeline_mode<synchronous>, transform_indices = @transform_6, window_bounds = array<i64: 128, 8>}, {pipeline_mode = #tpu.pipeline_mode<synchronous>, transform_indices = @transform_7, window_bounds = array<i64: 256, 512>}, {pipeline_mode = #tpu.pipeline_mode<synchronous>, transform_indices = @transform_8, window_bounds = array<i64: 512, 256>}, {pipeline_mode = #tpu.pipeline_mode<synchronous>, transform_indices = @transform_9, window_bounds = array<i64: 256, 8>}, {transform_indices = @transform_10, window_bounds = array<i64: 16, 8>}]} {
    %c0 = arith.constant 0 : index
    %c0_0 = arith.constant 0 : index
    %0 = vector.load %arg1[%c0, %c0_0] : memref<16x8xf32, #tpu.memory_space<vmem>>, vector<16x8xf32>
    %1 = vector.extract_strided_slice %0 {offsets = [0, 0], sizes = [16, 1], strides = [1, 1]} : vector<16x8xf32> to vector<16x1xf32>
    %c0_1 = arith.constant 0 : index
    %c0_2 = arith.constant 0 : index
    %2 = vector.load %arg2[%c0_1, %c0_2] : memref<16x512xf32, #tpu.memory_space<vmem>>, vector<1x128xf32>
    %c1 = arith.constant 1 : index
    %c0_3 = arith.constant 0 : index
    %3 = vector.load %arg2[%c1, %c0_3] : memref<16x512xf32, #tpu.memory_space<vmem>>, vector<1x128xf32>
    %c2 = arith.constant 2 : index
    %c0_4 = arith.constant 0 : index
    %4 = vector.load %arg2[%c2, %c0_4] : memref<16x512xf32, #tpu.memory_space<vmem>>, vector<1x256xf32>
    %c3 = arith.constant 3 : index
    %c0_5 = arith.constant 0 : index
    %5 = vector.load %arg2[%c3, %c0_5] : memref<16x512xf32, #tpu.memory_space<vmem>>, vector<1x512xf32>
    %c4 = arith.constant 4 : index
    %c0_6 = arith.constant 0 : index
    %6 = vector.load %arg2[%c4, %c0_6] : memref<16x512xf32, #tpu.memory_space<vmem>>, vector<1x256xf32>
    %c5 = arith.constant 5 : index
    %c0_7 = arith.constant 0 : index
    %7 = vector.load %arg2[%c5, %c0_7] : memref<16x512xf32, #tpu.memory_space<vmem>>, vector<1x128xf32>
    %c6 = arith.constant 6 : index
    %c0_8 = arith.constant 0 : index
    %8 = vector.load %arg2[%c6, %c0_8] : memref<16x512xf32, #tpu.memory_space<vmem>>, vector<1x8xf32>
    %c7 = arith.constant 7 : index
    %c0_9 = arith.constant 0 : index
    %9 = vector.load %arg2[%c7, %c0_9] : memref<16x512xf32, #tpu.memory_space<vmem>>, vector<1x256xf32>
    %c8 = arith.constant 8 : index
    %c0_10 = arith.constant 0 : index
    %10 = vector.load %arg2[%c8, %c0_10] : memref<16x512xf32, #tpu.memory_space<vmem>>, vector<1x512xf32>
    %c9 = arith.constant 9 : index
    %c0_11 = arith.constant 0 : index
    %11 = vector.load %arg2[%c9, %c0_11] : memref<16x512xf32, #tpu.memory_space<vmem>>, vector<1x256xf32>
    %c10 = arith.constant 10 : index
    %c0_12 = arith.constant 0 : index
    %12 = vector.load %arg2[%c10, %c0_12] : memref<16x512xf32, #tpu.memory_space<vmem>>, vector<1x8xf32>
    %c11 = arith.constant 11 : index
    %c0_13 = arith.constant 0 : index
    %13 = vector.load %arg2[%c11, %c0_13] : memref<16x512xf32, #tpu.memory_space<vmem>>, vector<1x256xf32>
    %c12 = arith.constant 12 : index
    %c0_14 = arith.constant 0 : index
    %14 = vector.load %arg2[%c12, %c0_14] : memref<16x512xf32, #tpu.memory_space<vmem>>, vector<1x256xf32>
    %c13 = arith.constant 13 : index
    %c0_15 = arith.constant 0 : index
    %15 = vector.load %arg2[%c13, %c0_15] : memref<16x512xf32, #tpu.memory_space<vmem>>, vector<1x256xf32>
    %c14 = arith.constant 14 : index
    %c0_16 = arith.constant 0 : index
    %16 = vector.load %arg2[%c14, %c0_16] : memref<16x512xf32, #tpu.memory_space<vmem>>, vector<1x256xf32>
    %17 = vector.broadcast %1 : vector<16x1xf32> to vector<16x128xf32>
    %18 = vector.broadcast %2 : vector<1x128xf32> to vector<16x128xf32>
    %19 = arith.mulf %17, %18 : vector<16x128xf32>
    %20 = vector.broadcast %3 : vector<1x128xf32> to vector<16x128xf32>
    %21 = arith.addf %19, %20 : vector<16x128xf32>
    %cst = arith.constant 0.000000e+00 : f32
    %22 = vector.broadcast %cst : f32 to vector<16x128xf32>
    %23 = arith.maximumf %21, %22 : vector<16x128xf32>
    %24 = arith.truncf %23 : vector<16x128xf32> to vector<16x128xbf16>
    %c0_17 = arith.constant 0 : index
    %c0_18 = arith.constant 0 : index
    %25 = vector.load %arg3[%c0_17, %c0_18] : memref<128x256xbf16, #tpu.memory_space<vmem>>, vector<128x256xbf16>
    %cst_19 = arith.constant dense<0.000000e+00> : vector<16x256xf32>
    %26 = tpu.matmul %24, %25, %cst_19 {dimension_numbers = #tpu.dot_dimension_numbers<[1], [0], [0], [1], [0, 0, 1, 1], [], []>} : vector<16x128xbf16>, vector<128x256xbf16>, vector<16x256xf32> -> vector<16x256xf32>
    %27 = vector.broadcast %4 : vector<1x256xf32> to vector<16x256xf32>
    %28 = arith.addf %26, %27 : vector<16x256xf32>
    %cst_20 = arith.constant 0.000000e+00 : f32
    %29 = vector.broadcast %cst_20 : f32 to vector<16x256xf32>
    %30 = arith.maximumf %28, %29 : vector<16x256xf32>
    %31 = arith.truncf %30 : vector<16x256xf32> to vector<16x256xbf16>
    %c0_21 = arith.constant 0 : index
    %c0_22 = arith.constant 0 : index
    %32 = vector.load %arg4[%c0_21, %c0_22] : memref<256x512xbf16, #tpu.memory_space<vmem>>, vector<256x512xbf16>
    %cst_23 = arith.constant dense<0.000000e+00> : vector<16x512xf32>
    %33 = tpu.matmul %31, %32, %cst_23 {dimension_numbers = #tpu.dot_dimension_numbers<[1], [0], [0], [1], [0, 0, 1, 1], [], []>} : vector<16x256xbf16>, vector<256x512xbf16>, vector<16x512xf32> -> vector<16x512xf32>
    %34 = vector.broadcast %5 : vector<1x512xf32> to vector<16x512xf32>
    %35 = arith.addf %33, %34 : vector<16x512xf32>
    %cst_24 = arith.constant 0.000000e+00 : f32
    %36 = vector.broadcast %cst_24 : f32 to vector<16x512xf32>
    %37 = arith.maximumf %35, %36 : vector<16x512xf32>
    %38 = arith.truncf %37 : vector<16x512xf32> to vector<16x512xbf16>
    %c0_25 = arith.constant 0 : index
    %c0_26 = arith.constant 0 : index
    %39 = vector.load %arg5[%c0_25, %c0_26] : memref<512x256xbf16, #tpu.memory_space<vmem>>, vector<512x256xbf16>
    %cst_27 = arith.constant dense<0.000000e+00> : vector<16x256xf32>
    %40 = tpu.matmul %38, %39, %cst_27 {dimension_numbers = #tpu.dot_dimension_numbers<[1], [0], [0], [1], [0, 0, 1, 1], [], []>} : vector<16x512xbf16>, vector<512x256xbf16>, vector<16x256xf32> -> vector<16x256xf32>
    %41 = vector.broadcast %6 : vector<1x256xf32> to vector<16x256xf32>
    %42 = arith.addf %40, %41 : vector<16x256xf32>
    %cst_28 = arith.constant 0.000000e+00 : f32
    %43 = vector.broadcast %cst_28 : f32 to vector<16x256xf32>
    %44 = arith.maximumf %42, %43 : vector<16x256xf32>
    %45 = arith.truncf %44 : vector<16x256xf32> to vector<16x256xbf16>
    %c0_29 = arith.constant 0 : index
    %c0_30 = arith.constant 0 : index
    %46 = vector.load %arg6[%c0_29, %c0_30] : memref<256x128xbf16, #tpu.memory_space<vmem>>, vector<256x128xbf16>
    %cst_31 = arith.constant dense<0.000000e+00> : vector<16x128xf32>
    %47 = tpu.matmul %45, %46, %cst_31 {dimension_numbers = #tpu.dot_dimension_numbers<[1], [0], [0], [1], [0, 0, 1, 1], [], []>} : vector<16x256xbf16>, vector<256x128xbf16>, vector<16x128xf32> -> vector<16x128xf32>
    %48 = vector.broadcast %7 : vector<1x128xf32> to vector<16x128xf32>
    %49 = arith.addf %47, %48 : vector<16x128xf32>
    %cst_32 = arith.constant 0.000000e+00 : f32
    %50 = vector.broadcast %cst_32 : f32 to vector<16x128xf32>
    %51 = arith.maximumf %49, %50 : vector<16x128xf32>
    %c0_33 = arith.constant 0 : index
    %c0_34 = arith.constant 0 : index
    %52 = vector.load %arg7[%c0_33, %c0_34] : memref<128x8xf32, #tpu.memory_space<vmem>>, vector<128x8xf32>
    %cst_35 = arith.constant dense<0.000000e+00> : vector<16x8xf32>
    %53 = tpu.matmul %51, %52, %cst_35 {dimension_numbers = #tpu.dot_dimension_numbers<[1], [0], [0], [1], [0, 0, 1, 1], [], []>} : vector<16x128xf32>, vector<128x8xf32>, vector<16x8xf32> -> vector<16x8xf32>
    %54 = vector.broadcast %8 : vector<1x8xf32> to vector<16x8xf32>
    %55 = arith.addf %53, %54 : vector<16x8xf32>
    %56 = vector.extract_strided_slice %55 {offsets = [0, 0], sizes = [16, 1], strides = [1, 1]} : vector<16x8xf32> to vector<16x1xf32>
    %57 = arith.negf %56 : vector<16x1xf32>
    %58 = math.exp %57 : vector<16x1xf32>
    %cst_36 = arith.constant 1.000000e+00 : f32
    %59 = vector.broadcast %cst_36 : f32 to vector<16x1xf32>
    %60 = arith.addf %59, %58 : vector<16x1xf32>
    %61 = arith.divf %59, %60 : vector<16x1xf32>
    %cst_37 = arith.constant 5.000000e-01 : f32
    %62 = vector.broadcast %cst_37 : f32 to vector<16x1xf32>
    %63 = arith.mulf %61, %62 : vector<16x1xf32>
    %cst_38 = arith.constant 1.000000e-01 : f32
    %64 = vector.broadcast %cst_38 : f32 to vector<16x1xf32>
    %65 = arith.addf %63, %64 : vector<16x1xf32>
    %66 = vector.extract_strided_slice %55 {offsets = [0, 1], sizes = [16, 1], strides = [1, 1]} : vector<16x8xf32> to vector<16x1xf32>
    %67 = arith.negf %66 : vector<16x1xf32>
    %68 = math.exp %67 : vector<16x1xf32>
    %cst_39 = arith.constant 1.000000e+00 : f32
    %69 = vector.broadcast %cst_39 : f32 to vector<16x1xf32>
    %70 = arith.addf %69, %68 : vector<16x1xf32>
    %71 = arith.divf %69, %70 : vector<16x1xf32>
    %cst_40 = arith.constant 8.000000e-02 : f32
    %72 = vector.broadcast %cst_40 : f32 to vector<16x1xf32>
    %73 = arith.mulf %71, %72 : vector<16x1xf32>
    %cst_41 = arith.constant 0.00999999977 : f32
    %74 = vector.broadcast %cst_41 : f32 to vector<16x1xf32>
    %75 = arith.addf %73, %74 : vector<16x1xf32>
    %76 = vector.extract_strided_slice %55 {offsets = [0, 2], sizes = [16, 1], strides = [1, 1]} : vector<16x8xf32> to vector<16x1xf32>
    %cst_42 = arith.constant 0.000000e+00 : f32
    %77 = vector.broadcast %cst_42 : f32 to vector<16x1xf32>
    %78 = arith.maximumf %76, %77 : vector<16x1xf32>
    %79 = vector.broadcast %cst_42 : f32 to vector<16x1xf32>
    %80 = arith.subf %76, %79 : vector<16x1xf32>
    %81 = arith.cmpf one, %80, %80 : vector<16x1xf32>
    %82 = vector.broadcast %cst_42 : f32 to vector<16x1xf32>
    %83 = arith.addf %76, %82 : vector<16x1xf32>
    %84 = math.absf %80 : vector<16x1xf32>
    %cst_43 = arith.constant 0.000000e+00 : f32
    %85 = vector.broadcast %cst_43 : f32 to vector<16x1xf32>
    %86 = arith.subf %85, %84 : vector<16x1xf32>
    %87 = math.exp %86 : vector<16x1xf32>
    %88 = math.log1p %87 : vector<16x1xf32>
    %89 = arith.addf %78, %88 : vector<16x1xf32>
    %90 = arith.select %81, %83, %89 : vector<16x1xi1>, vector<16x1xf32>
    %cst_44 = arith.constant 1.000000e+01 : f32
    %91 = vector.broadcast %cst_44 : f32 to vector<16x1xf32>
    %92 = arith.addf %90, %91 : vector<16x1xf32>
    %93 = vector.broadcast %1 : vector<16x1xf32> to vector<16x256xf32>
    %94 = vector.broadcast %13 : vector<1x256xf32> to vector<16x256xf32>
    %95 = arith.mulf %93, %94 : vector<16x256xf32>
    %96 = vector.broadcast %65 : vector<16x1xf32> to vector<16x256xf32>
    %97 = vector.broadcast %14 : vector<1x256xf32> to vector<16x256xf32>
    %98 = arith.mulf %96, %97 : vector<16x256xf32>
    %99 = arith.addf %95, %98 : vector<16x256xf32>
    %100 = vector.broadcast %75 : vector<16x1xf32> to vector<16x256xf32>
    %101 = vector.broadcast %15 : vector<1x256xf32> to vector<16x256xf32>
    %102 = arith.mulf %100, %101 : vector<16x256xf32>
    %103 = arith.addf %99, %102 : vector<16x256xf32>
    %104 = vector.broadcast %92 : vector<16x1xf32> to vector<16x256xf32>
    %105 = vector.broadcast %16 : vector<1x256xf32> to vector<16x256xf32>
    %106 = arith.mulf %104, %105 : vector<16x256xf32>
    %107 = arith.addf %103, %106 : vector<16x256xf32>
    %108 = vector.broadcast %9 : vector<1x256xf32> to vector<16x256xf32>
    %109 = arith.addf %107, %108 : vector<16x256xf32>
    %cst_45 = arith.constant 0.000000e+00 : f32
    %110 = vector.broadcast %cst_45 : f32 to vector<16x256xf32>
    %111 = arith.maximumf %109, %110 : vector<16x256xf32>
    %112 = arith.truncf %111 : vector<16x256xf32> to vector<16x256xbf16>
    %c0_46 = arith.constant 0 : index
    %c0_47 = arith.constant 0 : index
    %113 = vector.load %arg8[%c0_46, %c0_47] : memref<256x512xbf16, #tpu.memory_space<vmem>>, vector<256x512xbf16>
    %cst_48 = arith.constant dense<0.000000e+00> : vector<16x512xf32>
    %114 = tpu.matmul %112, %113, %cst_48 {dimension_numbers = #tpu.dot_dimension_numbers<[1], [0], [0], [1], [0, 0, 1, 1], [], []>} : vector<16x256xbf16>, vector<256x512xbf16>, vector<16x512xf32> -> vector<16x512xf32>
    %115 = vector.broadcast %10 : vector<1x512xf32> to vector<16x512xf32>
    %116 = arith.addf %114, %115 : vector<16x512xf32>
    %cst_49 = arith.constant 0.000000e+00 : f32
    %117 = vector.broadcast %cst_49 : f32 to vector<16x512xf32>
    %118 = arith.maximumf %116, %117 : vector<16x512xf32>
    %119 = arith.truncf %118 : vector<16x512xf32> to vector<16x512xbf16>
    %c0_50 = arith.constant 0 : index
    %c0_51 = arith.constant 0 : index
    %120 = vector.load %arg9[%c0_50, %c0_51] : memref<512x256xbf16, #tpu.memory_space<vmem>>, vector<512x256xbf16>
    %cst_52 = arith.constant dense<0.000000e+00> : vector<16x256xf32>
    %121 = tpu.matmul %119, %120, %cst_52 {dimension_numbers = #tpu.dot_dimension_numbers<[1], [0], [0], [1], [0, 0, 1, 1], [], []>} : vector<16x512xbf16>, vector<512x256xbf16>, vector<16x256xf32> -> vector<16x256xf32>
    %122 = vector.broadcast %11 : vector<1x256xf32> to vector<16x256xf32>
    %123 = arith.addf %121, %122 : vector<16x256xf32>
    %cst_53 = arith.constant 0.000000e+00 : f32
    %124 = vector.broadcast %cst_53 : f32 to vector<16x256xf32>
    %125 = arith.maximumf %123, %124 : vector<16x256xf32>
    %c0_54 = arith.constant 0 : index
    %c0_55 = arith.constant 0 : index
    %126 = vector.load %arg10[%c0_54, %c0_55] : memref<256x8xf32, #tpu.memory_space<vmem>>, vector<256x8xf32>
    %cst_56 = arith.constant dense<0.000000e+00> : vector<16x8xf32>
    %127 = tpu.matmul %125, %126, %cst_56 {dimension_numbers = #tpu.dot_dimension_numbers<[1], [0], [0], [1], [0, 0, 1, 1], [], []>} : vector<16x256xf32>, vector<256x8xf32>, vector<16x8xf32> -> vector<16x8xf32>
    %128 = vector.broadcast %12 : vector<1x8xf32> to vector<16x8xf32>
    %129 = arith.addf %127, %128 : vector<16x8xf32>
    %130 = vector.extract_strided_slice %129 {offsets = [0, 0], sizes = [16, 1], strides = [1, 1]} : vector<16x8xf32> to vector<16x1xf32>
    %131 = math.exp %130 : vector<16x1xf32>
    %132 = tpu.iota {dimensions = array<i32: 1>} : vector<16x8xi32>
    %c0_i32 = arith.constant 0 : i32
    %133 = vector.broadcast %c0_i32 : i32 to vector<16x8xi32>
    %134 = arith.cmpi eq, %132, %133 : vector<16x8xi32>
    %cst_57 = arith.constant 0.000000e+00 : f32
    %135 = vector.shape_cast %131 : vector<16x1xf32> to vector<16x1xf32>
    %136 = vector.broadcast %135 : vector<16x1xf32> to vector<16x8xf32>
    %137 = vector.broadcast %cst_57 : f32 to vector<16x8xf32>
    %138 = arith.select %134, %136, %137 : vector<16x8xi1>, vector<16x8xf32>
    %c1_i32 = arith.constant 1 : i32
    %139 = vector.broadcast %c1_i32 : i32 to vector<16x8xi32>
    %140 = arith.cmpi eq, %132, %139 : vector<16x8xi32>
    %cst_58 = arith.constant 0.000000e+00 : f32
    %141 = vector.shape_cast %65 : vector<16x1xf32> to vector<16x1xf32>
    %142 = vector.broadcast %141 : vector<16x1xf32> to vector<16x8xf32>
    %143 = vector.broadcast %cst_58 : f32 to vector<16x8xf32>
    %144 = arith.select %140, %142, %143 : vector<16x8xi1>, vector<16x8xf32>
    %145 = arith.addf %138, %144 : vector<16x8xf32>
    %c2_i32 = arith.constant 2 : i32
    %146 = vector.broadcast %c2_i32 : i32 to vector<16x8xi32>
    %147 = arith.cmpi eq, %132, %146 : vector<16x8xi32>
    %cst_59 = arith.constant 0.000000e+00 : f32
    %148 = vector.shape_cast %75 : vector<16x1xf32> to vector<16x1xf32>
    %149 = vector.broadcast %148 : vector<16x1xf32> to vector<16x8xf32>
    %150 = vector.broadcast %cst_59 : f32 to vector<16x8xf32>
    %151 = arith.select %147, %149, %150 : vector<16x8xi1>, vector<16x8xf32>
    %152 = arith.addf %145, %151 : vector<16x8xf32>
    %c3_i32 = arith.constant 3 : i32
    %153 = vector.broadcast %c3_i32 : i32 to vector<16x8xi32>
    %154 = arith.cmpi eq, %132, %153 : vector<16x8xi32>
    %cst_60 = arith.constant 0.000000e+00 : f32
    %155 = vector.shape_cast %92 : vector<16x1xf32> to vector<16x1xf32>
    %156 = vector.broadcast %155 : vector<16x1xf32> to vector<16x8xf32>
    %157 = vector.broadcast %cst_60 : f32 to vector<16x8xf32>
    %158 = arith.select %154, %156, %157 : vector<16x8xi1>, vector<16x8xf32>
    %159 = arith.addf %152, %158 : vector<16x8xf32>
    %c0_61 = arith.constant 0 : index
    %c0_62 = arith.constant 0 : index
    %160 = vector.load %arg11[%c0_61, %c0_62] : memref<16x8xf32, #tpu.memory_space<vmem>>, vector<16x8xf32>
    tpu.vector_store %arg11[%c0_61, %c0_62], %159 {strides = array<i32>} : memref<16x8xf32, #tpu.memory_space<vmem>>, vector<16x8xf32>,
    return
  }
  func.func @transform_0(%arg0: i32) -> (i32, i32) {
    %c0_i32 = arith.constant 0 : i32
    %c0_i32_0 = arith.constant 0 : i32
    return %arg0, %c0_i32 : i32, i32
  }
  func.func @transform_1(%arg0: i32) -> (i32, i32) {
    %c0_i32 = arith.constant 0 : i32
    %c0_i32_0 = arith.constant 0 : i32
    %c0_i32_1 = arith.constant 0 : i32
    return %c0_i32, %c0_i32_0 : i32, i32
  }
  func.func @transform_2(%arg0: i32) -> (i32, i32) {
    %c0_i32 = arith.constant 0 : i32
    %c0_i32_0 = arith.constant 0 : i32
    %c0_i32_1 = arith.constant 0 : i32
    return %c0_i32, %c0_i32_0 : i32, i32
  }
  func.func @transform_3(%arg0: i32) -> (i32, i32) {
    %c0_i32 = arith.constant 0 : i32
    %c0_i32_0 = arith.constant 0 : i32
    %c0_i32_1 = arith.constant 0 : i32
    return %c0_i32, %c0_i32_0 : i32, i32
  }
  func.func @transform_4(%arg0: i32) -> (i32, i32) {
    %c0_i32 = arith.constant 0 : i32
    %c0_i32_0 = arith.constant 0 : i32
    %c0_i32_1 = arith.constant 0 : i32
    return %c0_i32, %c0_i32_0 : i32, i32
  }
  func.func @transform_5(%arg0: i32) -> (i32, i32) {
    %c0_i32 = arith.constant 0 : i32
    %c0_i32_0 = arith.constant 0 : i32
    %c0_i32_1 = arith.constant 0 : i32
    return %c0_i32, %c0_i32_0 : i32, i32
  }
  func.func @transform_6(%arg0: i32) -> (i32, i32) {
    %c0_i32 = arith.constant 0 : i32
    %c0_i32_0 = arith.constant 0 : i32
    %c0_i32_1 = arith.constant 0 : i32
    return %c0_i32, %c0_i32_0 : i32, i32
  }
  func.func @transform_7(%arg0: i32) -> (i32, i32) {
    %c0_i32 = arith.constant 0 : i32
    %c0_i32_0 = arith.constant 0 : i32
    %c0_i32_1 = arith.constant 0 : i32
    return %c0_i32, %c0_i32_0 : i32, i32
  }
  func.func @transform_8(%arg0: i32) -> (i32, i32) {
    %c0_i32 = arith.constant 0 : i32
    %c0_i32_0 = arith.constant 0 : i32
    %c0_i32_1 = arith.constant 0 : i32
    return %c0_i32, %c0_i32_0 : i32, i32
  }
  func.func @transform_9(%arg0: i32) -> (i32, i32) {
    %c0_i32 = arith.constant 0 : i32
    %c0_i32_0 = arith.constant 0 : i32
    %c0_i32_1 = arith.constant 0 : i32
    return %c0_i32, %c0_i32_0 : i32, i32
  }
  func.func @transform_10(%arg0: i32) -> (i32, i32) {
    %c0_i32 = arith.constant 0 : i32
    %c0_i32_0 = arith.constant 0 : i32
    return %arg0, %c0_i32 : i32, i32
  }
}

</mosaic_0001>

<llo_original>
// kernel: tpu_custom_call.1
$region0: #{tpu_custom_call.1}
  #allocation0 [shape = 'u32[]', space=smem, size = 0x4, offset = 0x4, fixed_abs, tag = 'smem constant byte address 0x4 - core index']
  #allocation1 [shape = 'u32[144,128]{1,0:T(1,128)}', space=vmem, size = 0x12000, scoped, tag = 'internal scratch']
  %s0 = inlined_call_operand.vmem [shape: f32[16,8], index: 0, kind: input, shape index: {}]
  %s1 = inlined_call_operand.vmem [shape: f32[16,512], index: 1, kind: input, shape index: {}]
  %s2 = inlined_call_operand.vmem [shape: bf16[128,256], index: 2, kind: input, shape index: {}]
  %s3 = inlined_call_operand.hbm [shape: bf16[256,512], index: 3, kind: input, shape index: {}]
  %s4 = inlined_call_operand.hbm [shape: bf16[512,256], index: 4, kind: input, shape index: {}]
  %s5 = inlined_call_operand.vmem [shape: bf16[256,128], index: 5, kind: input, shape index: {}]
  %s6 = inlined_call_operand.vmem [shape: f32[128,8], index: 6, kind: input, shape index: {}]
  %s7 = inlined_call_operand.hbm [shape: bf16[256,512], index: 7, kind: input, shape index: {}]
  %s8 = inlined_call_operand.hbm [shape: bf16[512,256], index: 8, kind: input, shape index: {}]
  %s9 = inlined_call_operand.vmem [shape: f32[256,8], index: 9, kind: input, shape index: {}]
  %s10 = inlined_call_operand.vmem [shape: f32[16,8], index: 10, kind: output, shape index: {}]
  %s11 = sld [smem:[#allocation0]]
  $region66: #{tpu_custom_call.1} parent=0
    _
  %s13 = ssub.s32 1, %s11
  %s14 = scalar_select 0, %s13, %s11
  $region1: #{tpu_custom_call.1} parent=0
    #allocation2 [shape = 'u8[262144]{0}', space=vmem, size = 0x40000, scoped, tag = 'input window, operand 3, single buffered']
    #allocation3 [shape = 's32[1]{0}', space=sflag, size = 0x4, scoped, tag = 'scoped memory for tpu_custom_call.1']
    #allocation4 [shape = 'u8[262144]{0}', space=vmem, size = 0x40000, scoped, tag = 'input window, operand 4, single buffered']
    #allocation5 [shape = 's32[1]{0}', space=sflag, size = 0x4, scoped, tag = 'scoped memory for tpu_custom_call.1']
    #allocation6 [shape = 'u8[262144]{0}', space=vmem, size = 0x40000, scoped, tag = 'input window, operand 7, single buffered']
    #allocation7 [shape = 'u8[262144]{0}', space=vmem, size = 0x40000, scoped, tag = 'input window, operand 8, single buffered']
    #allocation8 [shape = 's32[1]{0}', space=sflag, size = 0x4, scoped, tag = 'scoped memory for tpu_custom_call.1']
    %15 = vsyncpa [#allocation3], 0
    %16 = vsyncpa [#allocation5], 0
    %17 = vsyncpa [#allocation8], 0
    // Predicated region
    $region2: #{tpu_custom_call.1} parent=1 // pred_check
      _
    $region3: #{tpu_custom_call.1} parent=1 // pred_check_branch
      %19 = sbr.rel (0) target = $region5
    $region4: #{tpu_custom_call.1} parent=1 // pred_region
      _
    $region5: #{tpu_custom_call.1} parent=1 // pred_fallthru
      _
    // Predicated region
    $region6: #{tpu_custom_call.1} parent=1 // pred_check
      _
    $region7: #{tpu_custom_call.1} parent=1 // pred_check_branch
      %21 = sbr.rel (0) target = $region9
    $region8: #{tpu_custom_call.1} parent=1 // pred_region
      _
    $region9: #{tpu_custom_call.1} parent=1 // pred_fallthru
      _
    // Predicated region
    $region10: #{tpu_custom_call.1} parent=1 // pred_check
      _
    $region11: #{tpu_custom_call.1} parent=1 // pred_check_branch
      %23 = sbr.rel (0) target = $region13
    $region12: #{tpu_custom_call.1} parent=1 // pred_region
      _
    $region13: #{tpu_custom_call.1} parent=1 // pred_fallthru
      _
    // Predicated region
    $region14: #{tpu_custom_call.1} parent=1 // pred_check
      _
    $region15: #{tpu_custom_call.1} parent=1 // pred_check_branch
      %25 = sbr.rel (0) target = $region17
    $region16: #{tpu_custom_call.1} parent=1 // pred_region
      %s27 = ssub.s32 8192, 8192
      %28 = vsyncadd [#allocation3], %s27
      %s29 = sshll.u32 [#allocation2], 4
      %s30 = int_to_ptr.vmem [resolvable:$true] %s29
      %35 = dma.hbm_to_vmem [thread:$0]  %s3, 8192, %s30, [#allocation3], 256, 256, 16
    $region17: #{tpu_custom_call.1} parent=1 // pred_fallthru
      _
    // Predicated region
    $region18: #{tpu_custom_call.1} parent=1 // pred_check
      _
    $region19: #{tpu_custom_call.1} parent=1 // pred_check_branch
      %37 = sbr.rel (0) target = $region21
    $region20: #{tpu_custom_call.1} parent=1 // pred_region
      %s39 = ssub.s32 8192, 8192
      %40 = vsyncadd [#allocation5], %s39
      %s41 = sshll.u32 [#allocation4], 4
      %s42 = int_to_ptr.vmem [resolvable:$true] %s41
      %47 = dma.hbm_to_vmem [thread:$0]  %s4, 8192, %s42, [#allocation5], 128, 128, 8
    $region21: #{tpu_custom_call.1} parent=1 // pred_fallthru
      _
    // Predicated region
    $region22: #{tpu_custom_call.1} parent=1 // pred_check
      _
    $region23: #{tpu_custom_call.1} parent=1 // pred_check_branch
      %49 = sbr.rel (0) target = $region25
    $region24: #{tpu_custom_call.1} parent=1 // pred_region
      _
    $region25: #{tpu_custom_call.1} parent=1 // pred_fallthru
      _
    // Predicated region
    $region26: #{tpu_custom_call.1} parent=1 // pred_check
      _
    $region27: #{tpu_custom_call.1} parent=1 // pred_check_branch
      %51 = sbr.rel (0) target = $region29
    $region28: #{tpu_custom_call.1} parent=1 // pred_region
      _
    $region29: #{tpu_custom_call.1} parent=1 // pred_fallthru
      _
    // Predicated region
    $region30: #{tpu_custom_call.1} parent=1 // pred_check
      _
    $region31: #{tpu_custom_call.1} parent=1 // pred_check_branch
      %53 = sbr.rel (0) target = $region33
    $region32: #{tpu_custom_call.1} parent=1 // pred_region
      %s55 = ssub.s32 8192, 8192
      %56 = vsyncadd [#allocation5], %s55
      %s57 = sshll.u32 [#allocation6], 4
      %s58 = int_to_ptr.vmem [resolvable:$true] %s57
      %63 = dma.hbm_to_vmem [thread:$0]  %s7, 8192, %s58, [#allocation5], 256, 256, 16
    $region33: #{tpu_custom_call.1} parent=1 // pred_fallthru
      _
    // Predicated region
    $region34: #{tpu_custom_call.1} parent=1 // pred_check
      _
    $region35: #{tpu_custom_call.1} parent=1 // pred_check_branch
      %65 = sbr.rel (0) target = $region37
    $region36: #{tpu_custom_call.1} parent=1 // pred_region
      %s67 = ssub.s32 8192, 8192
      %68 = vsyncadd [#allocation8], %s67
      %s69 = sshll.u32 [#allocation7], 4
      %s70 = int_to_ptr.vmem [resolvable:$true] %s69
      %75 = dma.hbm_to_vmem [thread:$0]  %s8, 8192, %s70, [#allocation8], 128, 128, 8
    $region37: #{tpu_custom_call.1} parent=1 // pred_fallthru
      _
    // Predicated region
    $region38: #{tpu_custom_call.1} parent=1 // pred_check
      _
    $region39: #{tpu_custom_call.1} parent=1 // pred_check_branch
      %77 = sbr.rel (0) target = $region41
    $region40: #{tpu_custom_call.1} parent=1 // pred_region
      _
    $region41: #{tpu_custom_call.1} parent=1 // pred_fallthru
      _
    // Predicated region
    $region42: #{tpu_custom_call.1} parent=1 // pred_check
      _
    $region43: #{tpu_custom_call.1} parent=1 // pred_check_branch
      %79 = sbr.rel (0) target = $region45
    $region44: #{tpu_custom_call.1} parent=1 // pred_region
      %80 = dma.done [#allocation3], 8192
    $region45: #{tpu_custom_call.1} parent=1 // pred_fallthru
      _
    // Predicated region
    $region46: #{tpu_custom_call.1} parent=1 // pred_check
      _
    $region47: #{tpu_custom_call.1} parent=1 // pred_check_branch
      %82 = sbr.rel (0) target = $region49
    $region48: #{tpu_custom_call.1} parent=1 // pred_region
      %83 = dma.done [#allocation5], 8192
    $region49: #{tpu_custom_call.1} parent=1 // pred_fallthru
      _
    // Predicated region
    $region50: #{tpu_custom_call.1} parent=1 // pred_check
      _
    $region51: #{tpu_custom_call.1} parent=1 // pred_check_branch
      %85 = sbr.rel (0) target = $region53
    $region52: #{tpu_custom_call.1} parent=1 // pred_region
      %86 = dma.done [#allocation5], 8192
    $region53: #{tpu_custom_call.1} parent=1 // pred_fallthru
      _
    // Predicated region
    $region54: #{tpu_custom_call.1} parent=1 // pred_check
      _
    $region55: #{tpu_custom_call.1} parent=1 // pred_check_branch
      %88 = sbr.rel (0) target = $region57
    $region56: #{tpu_custom_call.1} parent=1 // pred_region
      %89 = dma.done [#allocation8], 8192
    $region57: #{tpu_custom_call.1} parent=1 // pred_fallthru
      _
    %v91 = vld [vmem:[%s0] sm:$0xff]
    %v92 = vld [vmem:[%s0 + $0x8] sm:$0xff]
    %v93 = vld [vmem:[%s1] ss:$0 sm:$0xff]
    %v94 = vld [vmem:[%s1 + $0x1] ss:$0 sm:$0xff]
    %s95 = scalar_lea.vmem %s1, 2
    %v96 = vld [vmem:[%s95] ss:$8 sm:$0x3]
    %s97 = scalar_lea.vmem %s1, 3
    %v98 = vld [vmem:[%s97] ss:$8 sm:$0xf]
    %s99 = scalar_lea.vmem %s1, 4
    %v100 = vld [vmem:[%s99] ss:$8 sm:$0x3]
    %v101 = vld [vmem:[%s1 + $0x5] ss:$0 sm:$0xff]
    %v102 = vld [vmem:[%s1 + $0x6] ss:$0 sm:$0xff]
    %s103 = scalar_lea.vmem %s1, 7
    %v104 = vld [vmem:[%s103] ss:$8 sm:$0x3]
    %s105 = scalar_lea.vmem %s1, 32
    %v106 = vld [vmem:[%s105] ss:$8 sm:$0xf]
    %s107 = scalar_lea.vmem %s1, 33
    %v108 = vld [vmem:[%s107] ss:$8 sm:$0x3]
    %v109 = vld [vmem:[%s1 + $0x22] ss:$0 sm:$0xff]
    %s110 = scalar_lea.vmem %s1, 35
    %v111 = vld [vmem:[%s110] ss:$8 sm:$0x3]
    %s112 = scalar_lea.vmem %s1, 36
    %v113 = vld [vmem:[%s112] ss:$8 sm:$0x3]
    %s114 = scalar_lea.vmem %s1, 37
    %v115 = vld [vmem:[%s114] ss:$8 sm:$0x3]
    %s116 = scalar_lea.vmem %s1, 38
    %v117 = vld [vmem:[%s116] ss:$8 sm:$0x3]
    %119 = vset.pattern.permute.xlu0 0
    %120 = vperm.xlu0 %119, %v91
    %v121 = vpop.permute.xlu0 %120
    %124 = vset.pattern.permute.xlu0 0
    %125 = vperm.xlu0 %124, %v92
    %v126 = vpop.permute.xlu0 %125
    %v128 = vmul.f32 %v121, %v93
    %v129 = vmul.f32 %v126, %v93
    %v130 = vadd.f32 %v128, %v94
    %v131 = vadd.f32 %v129, %v94
    %v132 = vmax.f32 %v130, 0.0
    %v133 = vmax.f32 %v131, 0.0
    %v134 = vpack.c.bf16 %v133, %v132
    %v135 = vld [vmem:[%s2] sm:$0xff]
    %v136 = vld [vmem:[%s2 + $0x8] sm:$0xff]
    %v137 = vld [vmem:[%s2 + $0x10] sm:$0xff]
    %v138 = vld [vmem:[%s2 + $0x18] sm:$0xff]
    %v139 = vld [vmem:[%s2 + $0x20] sm:$0xff]
    %v140 = vld [vmem:[%s2 + $0x28] sm:$0xff]
    %v141 = vld [vmem:[%s2 + $0x30] sm:$0xff]
    %v142 = vld [vmem:[%s2 + $0x38] sm:$0xff]
    %v143 = vld [vmem:[%s2 + $0x40] sm:$0xff]
    %v144 = vld [vmem:[%s2 + $0x48] sm:$0xff]
    %v145 = vld [vmem:[%s2 + $0x50] sm:$0xff]
    %v146 = vld [vmem:[%s2 + $0x58] sm:$0xff]
    %v147 = vld [vmem:[%s2 + $0x60] sm:$0xff]
    %v148 = vld [vmem:[%s2 + $0x68] sm:$0xff]
    %v149 = vld [vmem:[%s2 + $0x70] sm:$0xff]
    %v150 = vld [vmem:[%s2 + $0x78] sm:$0xff]
    %v152 = vlaneseq
    %v153 = vshrl.u32 %v152, 7
    %v154 = vsub.s32 0, %v153
    %v155 = vrot.slane %v96, %v154
    %v156 = vlaneseq
    %v157 = vshrl.u32 %v156, 7
    %v158 = vsub.s32 1, %v157
    %v159 = vrot.slane %v96, %v158
    %v178 = vunpack.c.l.b16 %v135
    %v179 = vunpack.c.h.b16 %v135
    %v180 = vunpack.c.l.b16 %v136
    %v181 = vunpack.c.h.b16 %v136
    %v182 = vunpack.c.l.b16 %v137
    %v183 = vunpack.c.h.b16 %v137
    %v184 = vunpack.c.l.b16 %v138
    %v185 = vunpack.c.h.b16 %v138
    %v186 = vunpack.c.l.b16 %v139
    %v187 = vunpack.c.h.b16 %v139
    %v188 = vunpack.c.l.b16 %v140
    %v189 = vunpack.c.h.b16 %v140
    %v190 = vunpack.c.l.b16 %v141
    %v191 = vunpack.c.h.b16 %v141
    %v192 = vunpack.c.l.b16 %v142
    %v193 = vunpack.c.h.b16 %v142
    %v194 = vunpack.c.l.b16 %v143
    %v195 = vunpack.c.h.b16 %v143
    %v196 = vunpack.c.l.b16 %v144
    %v197 = vunpack.c.h.b16 %v144
    %v198 = vunpack.c.l.b16 %v145
    %v199 = vunpack.c.h.b16 %v145
    %v200 = vunpack.c.l.b16 %v146
    %v201 = vunpack.c.h.b16 %v146
    %v202 = vunpack.c.l.b16 %v147
    %v203 = vunpack.c.h.b16 %v147
    %v204 = vunpack.c.l.b16 %v148
    %v205 = vunpack.c.h.b16 %v148
    %v206 = vunpack.c.l.b16 %v149
    %v207 = vunpack.c.h.b16 %v149
    %v208 = vunpack.c.l.b16 %v150
    %v209 = vunpack.c.h.b16 %v150
    %v210 = vpack.c.b16 %v180, %v178
    %v211 = vpack.c.b16 %v181, %v179
    %v212 = vpack.c.b16 %v184, %v182
    %v213 = vpack.c.b16 %v185, %v183
    %v214 = vpack.c.b16 %v188, %v186
    %v215 = vpack.c.b16 %v189, %v187
    %v216 = vpack.c.b16 %v192, %v190
    %v217 = vpack.c.b16 %v193, %v191
    %v218 = vpack.c.b16 %v196, %v194
    %v219 = vpack.c.b16 %v197, %v195
    %v220 = vpack.c.b16 %v200, %v198
    %v221 = vpack.c.b16 %v201, %v199
    %v222 = vpack.c.b16 %v204, %v202
    %v223 = vpack.c.b16 %v205, %v203
    %v224 = vpack.c.b16 %v208, %v206
    %v225 = vpack.c.b16 %v209, %v207
    %242 = vmatprep.subr.bf16.mxu0 %v211
    %243 = vmatpush1.bf16.msra.mxu0 %v210
    %244 = vmatprep.subr.bf16.mxu0 %v213
    %245 = vmatpush1.bf16.msra.mxu0 %v212
    %246 = vmatprep.subr.bf16.mxu0 %v215
    %247 = vmatpush1.bf16.msra.mxu0 %v214
    %248 = vmatprep.subr.bf16.mxu0 %v217
    %249 = vmatpush1.bf16.msra.mxu0 %v216
    %250 = vmatprep.subr.bf16.mxu0 %v219
    %251 = vmatpush1.bf16.msra.mxu0 %v218
    %252 = vmatprep.subr.bf16.mxu0 %v221
    %253 = vmatpush1.bf16.msra.mxu0 %v220
    %254 = vmatprep.subr.bf16.mxu0 %v223
    %255 = vmatpush1.bf16.msra.mxu0 %v222
    %256 = vmatprep.subr.bf16.mxu0 %v225
    %257 = vmatpush1.bf16.msra.mxu0 %v224
    %258 = vmatprep.subr.bf16.mxu0 0
    %259 = vmatpush1.bf16.msra.mxu0 0
    %260 = vmatprep.subr.bf16.mxu0 0
    %261 = vmatpush1.bf16.msra.mxu0 0
    %262 = vmatprep.subr.bf16.mxu0 0
    %263 = vmatpush1.bf16.msra.mxu0 0
    %264 = vmatprep.subr.bf16.mxu0 0
    %265 = vmatpush1.bf16.msra.mxu0 0
    %266 = vmatprep.subr.bf16.mxu0 0
    %267 = vmatpush1.bf16.msra.mxu0 0
    %268 = vmatprep.subr.bf16.mxu0 0
    %269 = vmatpush1.bf16.msra.mxu0 0
    %270 = vmatprep.subr.bf16.mxu0 0
    %271 = vmatpush1.bf16.msra.mxu0 0
    %272 = vmatprep.subr.bf16.mxu0 0
    %273 = vmatpush1.bf16.msra.mxu0 0
    %274 = vmatprep.mubr.bf16.mxu0 0
    %275 = vmatmul.mubr.bf16.gmra.mrb[0].mxu0 %v134
    %v276 = vpop.f32.mrb[0].mxu0
    %v277 = vadd.f32 %v155, %v276
    %v278 = vpop.f32.mrb[0].mxu0
    %v279 = vadd.f32 %v159, %v278
    %v280 = vpop.f32.mrb[0].mxu0
    %v281 = vadd.f32 %v155, %v280
    %v282 = vpop.f32.mrb[0].mxu0
    %v283 = vadd.f32 %v159, %v282
    %284 = vdwg.mxu0
    %v285 = vmax.f32 %v277, 0.0
    %v286 = vmax.f32 %v279, 0.0
    %v287 = vmax.f32 %v281, 0.0
    %v288 = vmax.f32 %v283, 0.0
    %v289 = vpack.c.bf16 %v287, %v285
    %v290 = vpack.c.bf16 %v288, %v286
    %v291 = vld [vmem:[#allocation2] sm:$0xff]
    %v292 = vld [vmem:[#allocation2 + $0x8] sm:$0xff]
    %v293 = vld [vmem:[#allocation2 + $0x10] sm:$0xff]
    %v294 = vld [vmem:[#allocation2 + $0x18] sm:$0xff]
    %v295 = vld [vmem:[#allocation2 + $0x20] sm:$0xff]
    %v296 = vld [vmem:[#allocation2 + $0x28] sm:$0xff]
    %v297 = vld [vmem:[#allocation2 + $0x30] sm:$0xff]
    %v298 = vld [vmem:[#allocation2 + $0x38] sm:$0xff]
    %v299 = vld [vmem:[#allocation2 + $0x40] sm:$0xff]
    %v300 = vld [vmem:[#allocation2 + $0x48] sm:$0xff]
    %v301 = vld [vmem:[#allocation2 + $0x50] sm:$0xff]
    %v302 = vld [vmem:[#allocation2 + $0x58] sm:$0xff]
    %v303 = vld [vmem:[#allocation2 + $0x60] sm:$0xff]
    %v304 = vld [vmem:[#allocation2 + $0x68] sm:$0xff]
    %v305 = vld [vmem:[#allocation2 + $0x70] sm:$0xff]
    %v306 = vld [vmem:[#allocation2 + $0x78] sm:$0xff]
    %v307 = vld [vmem:[#allocation2 + $0x80] sm:$0xff]
    %v308 = vld [vmem:[#allocation2 + $0x88] sm:$0xff]
    %v309 = vld [vmem:[#allocation2 + $0x90] sm:$0xff]
    %v310 = vld [vmem:[#allocation2 + $0x98] sm:$0xff]
    %v311 = vld [vmem:[#allocation2 + $0xa0] sm:$0xff]
    %v312 = vld [vmem:[#allocation2 + $0xa8] sm:$0xff]
    %v313 = vld [vmem:[#allocation2 + $0xb0] sm:$0xff]
    %v314 = vld [vmem:[#allocation2 + $0xb8] sm:$0xff]
    %v315 = vld [vmem:[#allocation2 + $0xc0] sm:$0xff]
    %v316 = vld [vmem:[#allocation2 + $0xc8] sm:$0xff]
    %v317 = vld [vmem:[#allocation2 + $0xd0] sm:$0xff]
    %v318 = vld [vmem:[#allocation2 + $0xd8] sm:$0xff]
    %v319 = vld [vmem:[#allocation2 + $0xe0] sm:$0xff]
    %v320 = vld [vmem:[#allocation2 + $0xe8] sm:$0xff]
    %v321 = vld [vmem:[#allocation2 + $0xf0] sm:$0xff]
    %v322 = vld [vmem:[#allocation2 + $0xf8] sm:$0xff]
    %v323 = vld [vmem:[#allocation2 + $0x100] sm:$0xff]
    %v324 = vld [vmem:[#allocation2 + $0x108] sm:$0xff]
    %v325 = vld [vmem:[#allocation2 + $0x110] sm:$0xff]
    %v326 = vld [vmem:[#allocation2 + $0x118] sm:$0xff]
    %v327 = vld [vmem:[#allocation2 + $0x120] sm:$0xff]
    %v328 = vld [vmem:[#allocation2 + $0x128] sm:$0xff]
    %v329 = vld [vmem:[#allocation2 + $0x130] sm:$0xff]
    %v330 = vld [vmem:[#allocation2 + $0x138] sm:$0xff]
    %v331 = vld [vmem:[#allocation2 + $0x140] sm:$0xff]
    %v332 = vld [vmem:[#allocation2 + $0x148] sm:$0xff]
    %v333 = vld [vmem:[#allocation2 + $0x150] sm:$0xff]
    %v334 = vld [vmem:[#allocation2 + $0x158] sm:$0xff]
    %v335 = vld [vmem:[#allocation2 + $0x160] sm:$0xff]
    %v336 = vld [vmem:[#allocation2 + $0x168] sm:$0xff]
    %v337 = vld [vmem:[#allocation2 + $0x170] sm:$0xff]
    %v338 = vld [vmem:[#allocation2 + $0x178] sm:$0xff]
    %v339 = vld [vmem:[#allocation2 + $0x180] sm:$0xff]
    %v340 = vld [vmem:[#allocation2 + $0x188] sm:$0xff]
    %v341 = vld [vmem:[#allocation2 + $0x190] sm:$0xff]
    %v342 = vld [vmem:[#allocation2 + $0x198] sm:$0xff]
    %v343 = vld [vmem:[#allocation2 + $0x1a0] sm:$0xff]
    %v344 = vld [vmem:[#allocation2 + $0x1a8] sm:$0xff]
    %v345 = vld [vmem:[#allocation2 + $0x1b0] sm:$0xff]
    %v346 = vld [vmem:[#allocation2 + $0x1b8] sm:$0xff]
    %v347 = vld [vmem:[#allocation2 + $0x1c0] sm:$0xff]
    %v348 = vld [vmem:[#allocation2 + $0x1c8] sm:$0xff]
    %v349 = vld [vmem:[#allocation2 + $0x1d0] sm:$0xff]
    %v350 = vld [vmem:[#allocation2 + $0x1d8] sm:$0xff]
    %v351 = vld [vmem:[#allocation2 + $0x1e0] sm:$0xff]
    %v352 = vld [vmem:[#allocation2 + $0x1e8] sm:$0xff]
    %v353 = vld [vmem:[#allocation2 + $0x1f0] sm:$0xff]
    %v354 = vld [vmem:[#allocation2 + $0x1f8] sm:$0xff]
    %v356 = vlaneseq
    %v357 = vshrl.u32 %v356, 7
    %v358 = vsub.s32 0, %v357
    %v359 = vrot.slane %v98, %v358
    %v360 = vlaneseq
    %v361 = vshrl.u32 %v360, 7
    %v362 = vsub.s32 1, %v361
    %v363 = vrot.slane %v98, %v362
    %v364 = vlaneseq
    %v365 = vshrl.u32 %v364, 7
    %v366 = vsub.s32 2, %v365
    %v367 = vrot.slane %v98, %v366
    %v368 = vlaneseq
    %v369 = vshrl.u32 %v368, 7
    %v370 = vsub.s32 3, %v369
    %v371 = vrot.slane %v98, %v370
    %v440 = vunpack.c.l.b16 %v291
    %v441 = vunpack.c.h.b16 %v291
    %v442 = vunpack.c.l.b16 %v292
    %v443 = vunpack.c.h.b16 %v292
    %v444 = vunpack.c.l.b16 %v293
    %v445 = vunpack.c.h.b16 %v293
    %v446 = vunpack.c.l.b16 %v294
    %v447 = vunpack.c.h.b16 %v294
    %v448 = vunpack.c.l.b16 %v295
    %v449 = vunpack.c.h.b16 %v295
    %v450 = vunpack.c.l.b16 %v296
    %v451 = vunpack.c.h.b16 %v296
    %v452 = vunpack.c.l.b16 %v297
    %v453 = vunpack.c.h.b16 %v297
    %v454 = vunpack.c.l.b16 %v298
    %v455 = vunpack.c.h.b16 %v298
    %v456 = vunpack.c.l.b16 %v299
    %v457 = vunpack.c.h.b16 %v299
    %v458 = vunpack.c.l.b16 %v300
    %v459 = vunpack.c.h.b16 %v300
    %v460 = vunpack.c.l.b16 %v301
    %v461 = vunpack.c.h.b16 %v301
    %v462 = vunpack.c.l.b16 %v302
    %v463 = vunpack.c.h.b16 %v302
    %v464 = vunpack.c.l.b16 %v303
    %v465 = vunpack.c.h.b16 %v303
    %v466 = vunpack.c.l.b16 %v304
    %v467 = vunpack.c.h.b16 %v304
    %v468 = vunpack.c.l.b16 %v305
    %v469 = vunpack.c.h.b16 %v305
    %v470 = vunpack.c.l.b16 %v306
    %v471 = vunpack.c.h.b16 %v306
    %v472 = vunpack.c.l.b16 %v307
    %v473 = vunpack.c.h.b16 %v307
    %v474 = vunpack.c.l.b16 %v308
    %v475 = vunpack.c.h.b16 %v308
    %v476 = vunpack.c.l.b16 %v309
    %v477 = vunpack.c.h.b16 %v309
    %v478 = vunpack.c.l.b16 %v310
    %v479 = vunpack.c.h.b16 %v310
    %v480 = vunpack.c.l.b16 %v311
    %v481 = vunpack.c.h.b16 %v311
    %v482 = vunpack.c.l.b16 %v312
    %v483 = vunpack.c.h.b16 %v312
    %v484 = vunpack.c.l.b16 %v313
    %v485 = vunpack.c.h.b16 %v313
    %v486 = vunpack.c.l.b16 %v314
    %v487 = vunpack.c.h.b16 %v314
    %v488 = vunpack.c.l.b16 %v315
    %v489 = vunpack.c.h.b16 %v315
    %v490 = vunpack.c.l.b16 %v316
    %v491 = vunpack.c.h.b16 %v316
    %v492 = vunpack.c.l.b16 %v317
    %v493 = vunpack.c.h.b16 %v317
    %v494 = vunpack.c.l.b16 %v318
    %v495 = vunpack.c.h.b16 %v318
    %v496 = vunpack.c.l.b16 %v319
    %v497 = vunpack.c.h.b16 %v319
    %v498 = vunpack.c.l.b16 %v320
    %v499 = vunpack.c.h.b16 %v320
    %v500 = vunpack.c.l.b16 %v321
    %v501 = vunpack.c.h.b16 %v321
    %v502 = vunpack.c.l.b16 %v322
    %v503 = vunpack.c.h.b16 %v322
    %v504 = vunpack.c.l.b16 %v323
    %v505 = vunpack.c.h.b16 %v323
    %v506 = vunpack.c.l.b16 %v324
    %v507 = vunpack.c.h.b16 %v324
    %v508 = vunpack.c.l.b16 %v325
    %v509 = vunpack.c.h.b16 %v325
    %v510 = vunpack.c.l.b16 %v326
    %v511 = vunpack.c.h.b16 %v326
    %v512 = vunpack.c.l.b16 %v327
    %v513 = vunpack.c.h.b16 %v327
    %v514 = vunpack.c.l.b16 %v328
    %v515 = vunpack.c.h.b16 %v328
    %v516 = vunpack.c.l.b16 %v329
    %v517 = vunpack.c.h.b16 %v329
    %v518 = vunpack.c.l.b16 %v330
    %v519 = vunpack.c.h.b16 %v330
    %v520 = vunpack.c.l.b16 %v331
    %v521 = vunpack.c.h.b16 %v331
    %v522 = vunpack.c.l.b16 %v332
    %v523 = vunpack.c.h.b16 %v332
    %v524 = vunpack.c.l.b16 %v333
    %v525 = vunpack.c.h.b16 %v333
    %v526 = vunpack.c.l.b16 %v334
    %v527 = vunpack.c.h.b16 %v334
    %v528 = vunpack.c.l.b16 %v335
    %v529 = vunpack.c.h.b16 %v335
    %v530 = vunpack.c.l.b16 %v336
    %v531 = vunpack.c.h.b16 %v336
    %v532 = vunpack.c.l.b16 %v337
    %v533 = vunpack.c.h.b16 %v337
    %v534 = vunpack.c.l.b16 %v338
    %v535 = vunpack.c.h.b16 %v338
    %v536 = vunpack.c.l.b16 %v339
    %v537 = vunpack.c.h.b16 %v339
    %v538 = vunpack.c.l.b16 %v340
    %v539 = vunpack.c.h.b16 %v340
    %v540 = vunpack.c.l.b16 %v341
    %v541 = vunpack.c.h.b16 %v341
    %v542 = vunpack.c.l.b16 %v342
    %v543 = vunpack.c.h.b16 %v342
    %v544 = vunpack.c.l.b16 %v343
    %v545 = vunpack.c.h.b16 %v343
    %v546 = vunpack.c.l.b16 %v344
    %v547 = vunpack.c.h.b16 %v344
    %v548 = vunpack.c.l.b16 %v345
    %v549 = vunpack.c.h.b16 %v345
    %v550 = vunpack.c.l.b16 %v346
    %v551 = vunpack.c.h.b16 %v346
    %v552 = vunpack.c.l.b16 %v347
    %v553 = vunpack.c.h.b16 %v347
    %v554 = vunpack.c.l.b16 %v348
    %v555 = vunpack.c.h.b16 %v348
    %v556 = vunpack.c.l.b16 %v349
    %v557 = vunpack.c.h.b16 %v349
    %v558 = vunpack.c.l.b16 %v350
    %v559 = vunpack.c.h.b16 %v350
    %v560 = vunpack.c.l.b16 %v351
    %v561 = vunpack.c.h.b16 %v351
    %v562 = vunpack.c.l.b16 %v352
    %v563 = vunpack.c.h.b16 %v352
    %v564 = vunpack.c.l.b16 %v353
    %v565 = vunpack.c.h.b16 %v353
    %v566 = vunpack.c.l.b16 %v354
    %v567 = vunpack.c.h.b16 %v354
    %v568 = vpack.c.b16 %v444, %v440
    %v569 = vpack.c.b16 %v445, %v441
    %v570 = vpack.c.b16 %v446, %v442
    %v571 = vpack.c.b16 %v447, %v443
    %v572 = vpack.c.b16 %v452, %v448
    %v573 = vpack.c.b16 %v453, %v449
    %v574 = vpack.c.b16 %v454, %v450
    %v575 = vpack.c.b16 %v455, %v451
    %v576 = vpack.c.b16 %v460, %v456
    %v577 = vpack.c.b16 %v461, %v457
    %v578 = vpack.c.b16 %v462, %v458
    %v579 = vpack.c.b16 %v463, %v459
    %v580 = vpack.c.b16 %v468, %v464
    %v581 = vpack.c.b16 %v469, %v465
    %v582 = vpack.c.b16 %v470, %v466
    %v583 = vpack.c.b16 %v471, %v467
    %v584 = vpack.c.b16 %v476, %v472
    %v585 = vpack.c.b16 %v477, %v473
    %v586 = vpack.c.b16 %v478, %v474
    %v587 = vpack.c.b16 %v479, %v475
    %v588 = vpack.c.b16 %v484, %v480
    %v589 = vpack.c.b16 %v485, %v481
    %v590 = vpack.c.b16 %v486, %v482
    %v591 = vpack.c.b16 %v487, %v483
    %v592 = vpack.c.b16 %v492, %v488
    %v593 = vpack.c.b16 %v493, %v489
    %v594 = vpack.c.b16 %v494, %v490
    %v595 = vpack.c.b16 %v495, %v491
    %v596 = vpack.c.b16 %v500, %v496
    %v597 = vpack.c.b16 %v501, %v497
    %v598 = vpack.c.b16 %v502, %v498
    %v599 = vpack.c.b16 %v503, %v499
    %v600 = vpack.c.b16 %v508, %v504
    %v601 = vpack.c.b16 %v509, %v505
    %v602 = vpack.c.b16 %v510, %v506
    %v603 = vpack.c.b16 %v511, %v507
    %v604 = vpack.c.b16 %v516, %v512
    %v605 = vpack.c.b16 %v517, %v513
    %v606 = vpack.c.b16 %v518, %v514
    %v607 = vpack.c.b16 %v519, %v515
    %v608 = vpack.c.b16 %v524, %v520
    %v609 = vpack.c.b16 %v525, %v521
    %v610 = vpack.c.b16 %v526, %v522
    %v611 = vpack.c.b16 %v527, %v523
    %v612 = vpack.c.b16 %v532, %v528
    %v613 = vpack.c.b16 %v533, %v529
    %v614 = vpack.c.b16 %v534, %v530
    %v615 = vpack.c.b16 %v535, %v531
    %v616 = vpack.c.b16 %v540, %v536
    %v617 = vpack.c.b16 %v541, %v537
    %v618 = vpack.c.b16 %v542, %v538
    %v619 = vpack.c.b16 %v543, %v539
    %v620 = vpack.c.b16 %v548, %v544
    %v621 = vpack.c.b16 %v549, %v545
    %v622 = vpack.c.b16 %v550, %v546
    %v623 = vpack.c.b16 %v551, %v547
    %v624 = vpack.c.b16 %v556, %v552
    %v625 = vpack.c.b16 %v557, %v553
    %v626 = vpack.c.b16 %v558, %v554
    %v627 = vpack.c.b16 %v559, %v555
    %v628 = vpack.c.b16 %v564, %v560
    %v629 = vpack.c.b16 %v565, %v561
    %v630 = vpack.c.b16 %v566, %v562
    %v631 = vpack.c.b16 %v567, %v563
    %696 = vmatprep.subr.bf16.mxu0 %v569
    %697 = vmatpush1.bf16.msra.mxu0 %v568
    %698 = vmatprep.subr.bf16.mxu0 %v573
    %699 = vmatpush1.bf16.msra.mxu0 %v572
    %700 = vmatprep.subr.bf16.mxu0 %v577
    %701 = vmatpush1.bf16.msra.mxu0 %v576
    %702 = vmatprep.subr.bf16.mxu0 %v581
    %703 = vmatpush1.bf16.msra.mxu0 %v580
    %704 = vmatprep.subr.bf16.mxu0 %v585
    %705 = vmatpush1.bf16.msra.mxu0 %v584
    %706 = vmatprep.subr.bf16.mxu0 %v589
    %707 = vmatpush1.bf16.msra.mxu0 %v588
    %708 = vmatprep.subr.bf16.mxu0 %v593
    %709 = vmatpush1.bf16.msra.mxu0 %v592
    %710 = vmatprep.subr.bf16.mxu0 %v597
    %711 = vmatpush1.bf16.msra.mxu0 %v596
    %712 = vmatprep.subr.bf16.mxu0 %v601
    %713 = vmatpush1.bf16.msra.mxu0 %v600
    %714 = vmatprep.subr.bf16.mxu0 %v605
    %715 = vmatpush1.bf16.msra.mxu0 %v604
    %716 = vmatprep.subr.bf16.mxu0 %v609
    %717 = vmatpush1.bf16.msra.mxu0 %v608
    %718 = vmatprep.subr.bf16.mxu0 %v613
    %719 = vmatpush1.bf16.msra.mxu0 %v612
    %720 = vmatprep.subr.bf16.mxu0 %v617
    %721 = vmatpush1.bf16.msra.mxu0 %v616
    %722 = vmatprep.subr.bf16.mxu0 %v621
    %723 = vmatpush1.bf16.msra.mxu0 %v620
    %724 = vmatprep.subr.bf16.mxu0 %v625
    %725 = vmatpush1.bf16.msra.mxu0 %v624
    %726 = vmatprep.subr.bf16.mxu0 %v629
    %727 = vmatpush1.bf16.msra.mxu0 %v628
    %728 = vmatprep.mubr.bf16.mxu0 %v290
    %729 = vmatmul.mubr.bf16.gmra.mrb[0].mxu0 %v289
    %v730 = vpop.f32.mrb[0].mxu0
    %v731 = vadd.f32 %v359, %v730
    %v732 = vpop.f32.mrb[0].mxu0
    %v733 = vadd.f32 %v363, %v732
    %v734 = vpop.f32.mrb[0].mxu0
    %v735 = vadd.f32 %v359, %v734
    %v736 = vpop.f32.mrb[0].mxu0
    %v737 = vadd.f32 %v363, %v736
    %738 = vdwg.mxu0
    %739 = vmatprep.subr.bf16.mxu0 %v571
    %740 = vmatpush1.bf16.msra.mxu0 %v570
    %741 = vmatprep.subr.bf16.mxu0 %v575
    %742 = vmatpush1.bf16.msra.mxu0 %v574
    %743 = vmatprep.subr.bf16.mxu0 %v579
    %744 = vmatpush1.bf16.msra.mxu0 %v578
    %745 = vmatprep.subr.bf16.mxu0 %v583
    %746 = vmatpush1.bf16.msra.mxu0 %v582
    %747 = vmatprep.subr.bf16.mxu0 %v587
    %748 = vmatpush1.bf16.msra.mxu0 %v586
    %749 = vmatprep.subr.bf16.mxu0 %v591
    %750 = vmatpush1.bf16.msra.mxu0 %v590
    %751 = vmatprep.subr.bf16.mxu0 %v595
    %752 = vmatpush1.bf16.msra.mxu0 %v594
    %753 = vmatprep.subr.bf16.mxu0 %v599
    %754 = vmatpush1.bf16.msra.mxu0 %v598
    %755 = vmatprep.subr.bf16.mxu0 %v603
    %756 = vmatpush1.bf16.msra.mxu0 %v602
    %757 = vmatprep.subr.bf16.mxu0 %v607
    %758 = vmatpush1.bf16.msra.mxu0 %v606
    %759 = vmatprep.subr.bf16.mxu0 %v611
    %760 = vmatpush1.bf16.msra.mxu0 %v610
    %761 = vmatprep.subr.bf16.mxu0 %v615
    %762 = vmatpush1.bf16.msra.mxu0 %v614
    %763 = vmatprep.subr.bf16.mxu0 %v619
    %764 = vmatpush1.bf16.msra.mxu0 %v618
    %765 = vmatprep.subr.bf16.mxu0 %v623
    %766 = vmatpush1.bf16.msra.mxu0 %v622
    %767 = vmatprep.subr.bf16.mxu0 %v627
    %768 = vmatpush1.bf16.msra.mxu0 %v626
    %769 = vmatprep.subr.bf16.mxu0 %v631
    %770 = vmatpush1.bf16.msra.mxu0 %v630
    %771 = vmatprep.mubr.bf16.mxu0 %v290
    %772 = vmatmul.mubr.bf16.gmra.mrb[0].mxu0 %v289
    %v773 = vpop.f32.mrb[0].mxu0
    %v774 = vadd.f32 %v367, %v773
    %v775 = vpop.f32.mrb[0].mxu0
    %v776 = vadd.f32 %v371, %v775
    %v777 = vpop.f32.mrb[0].mxu0
    %v778 = vadd.f32 %v367, %v777
    %v779 = vpop.f32.mrb[0].mxu0
    %v780 = vadd.f32 %v371, %v779
    %781 = vdwg.mxu0
    %v782 = vmax.f32 %v731, 0.0
    %v783 = vmax.f32 %v733, 0.0
    %v784 = vmax.f32 %v774, 0.0
    %v785 = vmax.f32 %v776, 0.0
    %v786 = vmax.f32 %v735, 0.0
    %v787 = vmax.f32 %v737, 0.0
    %v788 = vmax.f32 %v778, 0.0
    %v789 = vmax.f32 %v780, 0.0
    %v790 = vpack.c.bf16 %v786, %v782
    %v791 = vpack.c.bf16 %v787, %v783
    %v792 = vpack.c.bf16 %v788, %v784
    %v793 = vpack.c.bf16 %v789, %v785
    %v794 = vld [vmem:[#allocation4] sm:$0xff]
    %v795 = vld [vmem:[#allocation4 + $0x8] sm:$0xff]
    %v796 = vld [vmem:[#allocation4 + $0x10] sm:$0xff]
    %v797 = vld [vmem:[#allocation4 + $0x18] sm:$0xff]
    %v798 = vld [vmem:[#allocation4 + $0x20] sm:$0xff]
    %v799 = vld [vmem:[#allocation4 + $0x28] sm:$0xff]
    %v800 = vld [vmem:[#allocation4 + $0x30] sm:$0xff]
    %v801 = vld [vmem:[#allocation4 + $0x38] sm:$0xff]
    %v802 = vld [vmem:[#allocation4 + $0x40] sm:$0xff]
    %v803 = vld [vmem:[#allocation4 + $0x48] sm:$0xff]
    %v804 = vld [vmem:[#allocation4 + $0x50] sm:$0xff]
    %v805 = vld [vmem:[#allocation4 + $0x58] sm:$0xff]
    %v806 = vld [vmem:[#allocation4 + $0x60] sm:$0xff]
    %v807 = vld [vmem:[#allocation4 + $0x68] sm:$0xff]
    %v808 = vld [vmem:[#allocation4 + $0x70] sm:$0xff]
    %v809 = vld [vmem:[#allocation4 + $0x78] sm:$0xff]
    %v810 = vld [vmem:[#allocation4 + $0x80] sm:$0xff]
    %v811 = vld [vmem:[#allocation4 + $0x88] sm:$0xff]
    %v812 = vld [vmem:[#allocation4 + $0x90] sm:$0xff]
    %v813 = vld [vmem:[#allocation4 + $0x98] sm:$0xff]
    %v814 = vld [vmem:[#allocation4 + $0xa0] sm:$0xff]
    %v815 = vld [vmem:[#allocation4 + $0xa8] sm:$0xff]
    %v816 = vld [vmem:[#allocation4 + $0xb0] sm:$0xff]
    %v817 = vld [vmem:[#allocation4 + $0xb8] sm:$0xff]
    %v818 = vld [vmem:[#allocation4 + $0xc0] sm:$0xff]
    %v819 = vld [vmem:[#allocation4 + $0xc8] sm:$0xff]
    %v820 = vld [vmem:[#allocation4 + $0xd0] sm:$0xff]
    %v821 = vld [vmem:[#allocation4 + $0xd8] sm:$0xff]
    %v822 = vld [vmem:[#allocation4 + $0xe0] sm:$0xff]
    %v823 = vld [vmem:[#allocation4 + $0xe8] sm:$0xff]
    %v824 = vld [vmem:[#allocation4 + $0xf0] sm:$0xff]
    %v825 = vld [vmem:[#allocation4 + $0xf8] sm:$0xff]
    %v826 = vld [vmem:[#allocation4 + $0x100] sm:$0xff]
    %v827 = vld [vmem:[#allocation4 + $0x108] sm:$0xff]
    %v828 = vld [vmem:[#allocation4 + $0x110] sm:$0xff]
    %v829 = vld [vmem:[#allocation4 + $0x118] sm:$0xff]
    %v830 = vld [vmem:[#allocation4 + $0x120] sm:$0xff]
    %v831 = vld [vmem:[#allocation4 + $0x128] sm:$0xff]
    %v832 = vld [vmem:[#allocation4 + $0x130] sm:$0xff]
    %v833 = vld [vmem:[#allocation4 + $0x138] sm:$0xff]
    %v834 = vld [vmem:[#allocation4 + $0x140] sm:$0xff]
    %v835 = vld [vmem:[#allocation4 + $0x148] sm:$0xff]
    %v836 = vld [vmem:[#allocation4 + $0x150] sm:$0xff]
    %v837 = vld [vmem:[#allocation4 + $0x158] sm:$0xff]
    %v838 = vld [vmem:[#allocation4 + $0x160] sm:$0xff]
    %v839 = vld [vmem:[#allocation4 + $0x168] sm:$0xff]
    %v840 = vld [vmem:[#allocation4 + $0x170] sm:$0xff]
    %v841 = vld [vmem:[#allocation4 + $0x178] sm:$0xff]
    %v842 = vld [vmem:[#allocation4 + $0x180] sm:$0xff]
    %v843 = vld [vmem:[#allocation4 + $0x188] sm:$0xff]
    %v844 = vld [vmem:[#allocation4 + $0x190] sm:$0xff]
    %v845 = vld [vmem:[#allocation4 + $0x198] sm:$0xff]
    %v846 = vld [vmem:[#allocation4 + $0x1a0] sm:$0xff]
    %v847 = vld [vmem:[#allocation4 + $0x1a8] sm:$0xff]
    %v848 = vld [vmem:[#allocation4 + $0x1b0] sm:$0xff]
    %v849 = vld [vmem:[#allocation4 + $0x1b8] sm:$0xff]
    %v850 = vld [vmem:[#allocation4 + $0x1c0] sm:$0xff]
    %v851 = vld [vmem:[#allocation4 + $0x1c8] sm:$0xff]
    %v852 = vld [vmem:[#allocation4 + $0x1d0] sm:$0xff]
    %v853 = vld [vmem:[#allocation4 + $0x1d8] sm:$0xff]
    %v854 = vld [vmem:[#allocation4 + $0x1e0] sm:$0xff]
    %v855 = vld [vmem:[#allocation4 + $0x1e8] sm:$0xff]
    %v856 = vld [vmem:[#allocation4 + $0x1f0] sm:$0xff]
    %v857 = vld [vmem:[#allocation4 + $0x1f8] sm:$0xff]
    %v859 = vlaneseq
    %v860 = vshrl.u32 %v859, 7
    %v861 = vsub.s32 0, %v860
    %v862 = vrot.slane %v100, %v861
    %v863 = vlaneseq
    %v864 = vshrl.u32 %v863, 7
    %v865 = vsub.s32 1, %v864
    %v866 = vrot.slane %v100, %v865
    %v933 = vunpack.c.l.b16 %v794
    %v934 = vunpack.c.h.b16 %v794
    %v935 = vunpack.c.l.b16 %v795
    %v936 = vunpack.c.h.b16 %v795
    %v937 = vunpack.c.l.b16 %v796
    %v938 = vunpack.c.h.b16 %v796
    %v939 = vunpack.c.l.b16 %v797
    %v940 = vunpack.c.h.b16 %v797
    %v941 = vunpack.c.l.b16 %v798
    %v942 = vunpack.c.h.b16 %v798
    %v943 = vunpack.c.l.b16 %v799
    %v944 = vunpack.c.h.b16 %v799
    %v945 = vunpack.c.l.b16 %v800
    %v946 = vunpack.c.h.b16 %v800
    %v947 = vunpack.c.l.b16 %v801
    %v948 = vunpack.c.h.b16 %v801
    %v949 = vunpack.c.l.b16 %v802
    %v950 = vunpack.c.h.b16 %v802
    %v951 = vunpack.c.l.b16 %v803
    %v952 = vunpack.c.h.b16 %v803
    %v953 = vunpack.c.l.b16 %v804
    %v954 = vunpack.c.h.b16 %v804
    %v955 = vunpack.c.l.b16 %v805
    %v956 = vunpack.c.h.b16 %v805
    %v957 = vunpack.c.l.b16 %v806
    %v958 = vunpack.c.h.b16 %v806
    %v959 = vunpack.c.l.b16 %v807
    %v960 = vunpack.c.h.b16 %v807
    %v961 = vunpack.c.l.b16 %v808
    %v962 = vunpack.c.h.b16 %v808
    %v963 = vunpack.c.l.b16 %v809
    %v964 = vunpack.c.h.b16 %v809
    %v965 = vunpack.c.l.b16 %v810
    %v966 = vunpack.c.h.b16 %v810
    %v967 = vunpack.c.l.b16 %v811
    %v968 = vunpack.c.h.b16 %v811
    %v969 = vunpack.c.l.b16 %v812
    %v970 = vunpack.c.h.b16 %v812
    %v971 = vunpack.c.l.b16 %v813
    %v972 = vunpack.c.h.b16 %v813
    %v973 = vunpack.c.l.b16 %v814
    %v974 = vunpack.c.h.b16 %v814
    %v975 = vunpack.c.l.b16 %v815
    %v976 = vunpack.c.h.b16 %v815
    %v977 = vunpack.c.l.b16 %v816
    %v978 = vunpack.c.h.b16 %v816
    %v979 = vunpack.c.l.b16 %v817
    %v980 = vunpack.c.h.b16 %v817
    %v981 = vunpack.c.l.b16 %v818
    %v982 = vunpack.c.h.b16 %v818
    %v983 = vunpack.c.l.b16 %v819
    %v984 = vunpack.c.h.b16 %v819
    %v985 = vunpack.c.l.b16 %v820
    %v986 = vunpack.c.h.b16 %v820
    %v987 = vunpack.c.l.b16 %v821
    %v988 = vunpack.c.h.b16 %v821
    %v989 = vunpack.c.l.b16 %v822
    %v990 = vunpack.c.h.b16 %v822
    %v991 = vunpack.c.l.b16 %v823
    %v992 = vunpack.c.h.b16 %v823
    %v993 = vunpack.c.l.b16 %v824
    %v994 = vunpack.c.h.b16 %v824
    %v995 = vunpack.c.l.b16 %v825
    %v996 = vunpack.c.h.b16 %v825
    %v997 = vunpack.c.l.b16 %v826
    %v998 = vunpack.c.h.b16 %v826
    %v999 = vunpack.c.l.b16 %v827
    %v1000 = vunpack.c.h.b16 %v827
    %v1001 = vunpack.c.l.b16 %v828
    %v1002 = vunpack.c.h.b16 %v828
    %v1003 = vunpack.c.l.b16 %v829
    %v1004 = vunpack.c.h.b16 %v829
    %v1005 = vunpack.c.l.b16 %v830
    %v1006 = vunpack.c.h.b16 %v830
    %v1007 = vunpack.c.l.b16 %v831
    %v1008 = vunpack.c.h.b16 %v831
    %v1009 = vunpack.c.l.b16 %v832
    %v1010 = vunpack.c.h.b16 %v832
    %v1011 = vunpack.c.l.b16 %v833
    %v1012 = vunpack.c.h.b16 %v833
    %v1013 = vunpack.c.l.b16 %v834
    %v1014 = vunpack.c.h.b16 %v834
    %v1015 = vunpack.c.l.b16 %v835
    %v1016 = vunpack.c.h.b16 %v835
    %v1017 = vunpack.c.l.b16 %v836
    %v1018 = vunpack.c.h.b16 %v836
    %v1019 = vunpack.c.l.b16 %v837
    %v1020 = vunpack.c.h.b16 %v837
    %v1021 = vunpack.c.l.b16 %v838
    %v1022 = vunpack.c.h.b16 %v838
    %v1023 = vunpack.c.l.b16 %v839
    %v1024 = vunpack.c.h.b16 %v839
    %v1025 = vunpack.c.l.b16 %v840
    %v1026 = vunpack.c.h.b16 %v840
    %v1027 = vunpack.c.l.b16 %v841
    %v1028 = vunpack.c.h.b16 %v841
    %v1029 = vunpack.c.l.b16 %v842
    %v1030 = vunpack.c.h.b16 %v842
    %v1031 = vunpack.c.l.b16 %v843
    %v1032 = vunpack.c.h.b16 %v843
    %v1033 = vunpack.c.l.b16 %v844
    %v1034 = vunpack.c.h.b16 %v844
    %v1035 = vunpack.c.l.b16 %v845
    %v1036 = vunpack.c.h.b16 %v845
    %v1037 = vunpack.c.l.b16 %v846
    %v1038 = vunpack.c.h.b16 %v846
    %v1039 = vunpack.c.l.b16 %v847
    %v1040 = vunpack.c.h.b16 %v847
    %v1041 = vunpack.c.l.b16 %v848
    %v1042 = vunpack.c.h.b16 %v848
    %v1043 = vunpack.c.l.b16 %v849
    %v1044 = vunpack.c.h.b16 %v849
    %v1045 = vunpack.c.l.b16 %v850
    %v1046 = vunpack.c.h.b16 %v850
    %v1047 = vunpack.c.l.b16 %v851
    %v1048 = vunpack.c.h.b16 %v851
    %v1049 = vunpack.c.l.b16 %v852
    %v1050 = vunpack.c.h.b16 %v852
    %v1051 = vunpack.c.l.b16 %v853
    %v1052 = vunpack.c.h.b16 %v853
    %v1053 = vunpack.c.l.b16 %v854
    %v1054 = vunpack.c.h.b16 %v854
    %v1055 = vunpack.c.l.b16 %v855
    %v1056 = vunpack.c.h.b16 %v855
    %v1057 = vunpack.c.l.b16 %v856
    %v1058 = vunpack.c.h.b16 %v856
    %v1059 = vunpack.c.l.b16 %v857
    %v1060 = vunpack.c.h.b16 %v857
    %v1061 = vpack.c.b16 %v935, %v933
    %v1062 = vpack.c.b16 %v936, %v934
    %v1063 = vpack.c.b16 %v939, %v937
    %v1064 = vpack.c.b16 %v940, %v938
    %v1065 = vpack.c.b16 %v943, %v941
    %v1066 = vpack.c.b16 %v944, %v942
    %v1067 = vpack.c.b16 %v947, %v945
    %v1068 = vpack.c.b16 %v948, %v946
    %v1069 = vpack.c.b16 %v951, %v949
    %v1070 = vpack.c.b16 %v952, %v950
    %v1071 = vpack.c.b16 %v955, %v953
    %v1072 = vpack.c.b16 %v956, %v954
    %v1073 = vpack.c.b16 %v959, %v957
    %v1074 = vpack.c.b16 %v960, %v958
    %v1075 = vpack.c.b16 %v963, %v961
    %v1076 = vpack.c.b16 %v964, %v962
    %v1077 = vpack.c.b16 %v967, %v965
    %v1078 = vpack.c.b16 %v968, %v966
    %v1079 = vpack.c.b16 %v971, %v969
    %v1080 = vpack.c.b16 %v972, %v970
    %v1081 = vpack.c.b16 %v975, %v973
    %v1082 = vpack.c.b16 %v976, %v974
    %v1083 = vpack.c.b16 %v979, %v977
    %v1084 = vpack.c.b16 %v980, %v978
    %v1085 = vpack.c.b16 %v983, %v981
    %v1086 = vpack.c.b16 %v984, %v982
    %v1087 = vpack.c.b16 %v987, %v985
    %v1088 = vpack.c.b16 %v988, %v986
    %v1089 = vpack.c.b16 %v991, %v989
    %v1090 = vpack.c.b16 %v992, %v990
    %v1091 = vpack.c.b16 %v995, %v993
    %v1092 = vpack.c.b16 %v996, %v994
    %v1093 = vpack.c.b16 %v999, %v997
    %v1094 = vpack.c.b16 %v1000, %v998
    %v1095 = vpack.c.b16 %v1003, %v1001
    %v1096 = vpack.c.b16 %v1004, %v1002
    %v1097 = vpack.c.b16 %v1007, %v1005
    %v1098 = vpack.c.b16 %v1008, %v1006
    %v1099 = vpack.c.b16 %v1011, %v1009
    %v1100 = vpack.c.b16 %v1012, %v1010
    %v1101 = vpack.c.b16 %v1015, %v1013
    %v1102 = vpack.c.b16 %v1016, %v1014
    %v1103 = vpack.c.b16 %v1019, %v1017
    %v1104 = vpack.c.b16 %v1020, %v1018
    %v1105 = vpack.c.b16 %v1023, %v1021
    %v1106 = vpack.c.b16 %v1024, %v1022
    %v1107 = vpack.c.b16 %v1027, %v1025
    %v1108 = vpack.c.b16 %v1028, %v1026
    %v1109 = vpack.c.b16 %v1031, %v1029
    %v1110 = vpack.c.b16 %v1032, %v1030
    %v1111 = vpack.c.b16 %v1035, %v1033
    %v1112 = vpack.c.b16 %v1036, %v1034
    %v1113 = vpack.c.b16 %v1039, %v1037
    %v1114 = vpack.c.b16 %v1040, %v1038
    %v1115 = vpack.c.b16 %v1043, %v1041
    %v1116 = vpack.c.b16 %v1044, %v1042
    %v1117 = vpack.c.b16 %v1047, %v1045
    %v1118 = vpack.c.b16 %v1048, %v1046
    %v1119 = vpack.c.b16 %v1051, %v1049
    %v1120 = vpack.c.b16 %v1052, %v1050
    %v1121 = vpack.c.b16 %v1055, %v1053
    %v1122 = vpack.c.b16 %v1056, %v1054
    %v1123 = vpack.c.b16 %v1059, %v1057
    %v1124 = vpack.c.b16 %v1060, %v1058
    %1189 = vmatprep.subr.bf16.mxu0 %v1062
    %1190 = vmatpush1.bf16.msra.mxu0 %v1061
    %1191 = vmatprep.subr.bf16.mxu0 %v1064
    %1192 = vmatpush1.bf16.msra.mxu0 %v1063
    %1193 = vmatprep.subr.bf16.mxu0 %v1066
    %1194 = vmatpush1.bf16.msra.mxu0 %v1065
    %1195 = vmatprep.subr.bf16.mxu0 %v1068
    %1196 = vmatpush1.bf16.msra.mxu0 %v1067
    %1197 = vmatprep.subr.bf16.mxu0 %v1070
    %1198 = vmatpush1.bf16.msra.mxu0 %v1069
    %1199 = vmatprep.subr.bf16.mxu0 %v1072
    %1200 = vmatpush1.bf16.msra.mxu0 %v1071
    %1201 = vmatprep.subr.bf16.mxu0 %v1074
    %1202 = vmatpush1.bf16.msra.mxu0 %v1073
    %1203 = vmatprep.subr.bf16.mxu0 %v1076
    %1204 = vmatpush1.bf16.msra.mxu0 %v1075
    %1205 = vmatprep.subr.bf16.mxu0 %v1078
    %1206 = vmatpush1.bf16.msra.mxu0 %v1077
    %1207 = vmatprep.subr.bf16.mxu0 %v1080
    %1208 = vmatpush1.bf16.msra.mxu0 %v1079
    %1209 = vmatprep.subr.bf16.mxu0 %v1082
    %1210 = vmatpush1.bf16.msra.mxu0 %v1081
    %1211 = vmatprep.subr.bf16.mxu0 %v1084
    %1212 = vmatpush1.bf16.msra.mxu0 %v1083
    %1213 = vmatprep.subr.bf16.mxu0 %v1086
    %1214 = vmatpush1.bf16.msra.mxu0 %v1085
    %1215 = vmatprep.subr.bf16.mxu0 %v1088
    %1216 = vmatpush1.bf16.msra.mxu0 %v1087
    %1217 = vmatprep.subr.bf16.mxu0 %v1090
    %1218 = vmatpush1.bf16.msra.mxu0 %v1089
    %1219 = vmatprep.subr.bf16.mxu0 %v1092
    %1220 = vmatpush1.bf16.msra.mxu0 %v1091
    %1221 = vmatprep.mubr.bf16.mxu0 %v791
    %1222 = vmatmul.mubr.bf16.gmra.mrb[0].mxu0 %v790
    %v1223 = vpop.f32.mrb[0].mxu0
    %v1224 = vadd.f32 %v862, %v1223
    %v1225 = vpop.f32.mrb[0].mxu0
    %v1226 = vadd.f32 %v866, %v1225
    %v1227 = vpop.f32.mrb[0].mxu0
    %v1228 = vadd.f32 %v862, %v1227
    %v1229 = vpop.f32.mrb[0].mxu0
    %v1230 = vadd.f32 %v866, %v1229
    %1231 = vdwg.mxu0
    %1232 = vmatprep.subr.bf16.mxu0 %v1094
    %1233 = vmatpush1.bf16.msra.mxu0 %v1093
    %1234 = vmatprep.subr.bf16.mxu0 %v1096
    %1235 = vmatpush1.bf16.msra.mxu0 %v1095
    %1236 = vmatprep.subr.bf16.mxu0 %v1098
    %1237 = vmatpush1.bf16.msra.mxu0 %v1097
    %1238 = vmatprep.subr.bf16.mxu0 %v1100
    %1239 = vmatpush1.bf16.msra.mxu0 %v1099
    %1240 = vmatprep.subr.bf16.mxu0 %v1102
    %1241 = vmatpush1.bf16.msra.mxu0 %v1101
    %1242 = vmatprep.subr.bf16.mxu0 %v1104
    %1243 = vmatpush1.bf16.msra.mxu0 %v1103
    %1244 = vmatprep.subr.bf16.mxu0 %v1106
    %1245 = vmatpush1.bf16.msra.mxu0 %v1105
    %1246 = vmatprep.subr.bf16.mxu0 %v1108
    %1247 = vmatpush1.bf16.msra.mxu0 %v1107
    %1248 = vmatprep.subr.bf16.mxu0 %v1110
    %1249 = vmatpush1.bf16.msra.mxu0 %v1109
    %1250 = vmatprep.subr.bf16.mxu0 %v1112
    %1251 = vmatpush1.bf16.msra.mxu0 %v1111
    %1252 = vmatprep.subr.bf16.mxu0 %v1114
    %1253 = vmatpush1.bf16.msra.mxu0 %v1113
    %1254 = vmatprep.subr.bf16.mxu0 %v1116
    %1255 = vmatpush1.bf16.msra.mxu0 %v1115
    %1256 = vmatprep.subr.bf16.mxu0 %v1118
    %1257 = vmatpush1.bf16.msra.mxu0 %v1117
    %1258 = vmatprep.subr.bf16.mxu0 %v1120
    %1259 = vmatpush1.bf16.msra.mxu0 %v1119
    %1260 = vmatprep.subr.bf16.mxu0 %v1122
    %1261 = vmatpush1.bf16.msra.mxu0 %v1121
    %1262 = vmatprep.subr.bf16.mxu0 %v1124
    %1263 = vmatpush1.bf16.msra.mxu0 %v1123
    %1264 = vmatprep.mubr.bf16.mxu0 %v793
    %1265 = vmatmul.mubr.bf16.gmra.mrb[0].mxu0 %v792
    %v1266 = vpop.f32.mrb[0].mxu0
    %v1267 = vadd.f32 %v1224, %v1266
    %v1268 = vpop.f32.mrb[0].mxu0
    %v1269 = vadd.f32 %v1226, %v1268
    %v1270 = vpop.f32.mrb[0].mxu0
    %v1271 = vadd.f32 %v1228, %v1270
    %v1272 = vpop.f32.mrb[0].mxu0
    %v1273 = vadd.f32 %v1230, %v1272
    %1274 = vdwg.mxu0
    %v1275 = vmax.f32 %v1267, 0.0
    %v1276 = vmax.f32 %v1269, 0.0
    %v1277 = vmax.f32 %v1271, 0.0
    %v1278 = vmax.f32 %v1273, 0.0
    %v1279 = vpack.c.bf16 %v1277, %v1275
    %v1280 = vpack.c.bf16 %v1278, %v1276
    %v1281 = vld [vmem:[%s5] sm:$0xf]
    %v1282 = vld [vmem:[%s5 + $0x4] sm:$0xf]
    %v1283 = vld [vmem:[%s5 + $0x8] sm:$0xf]
    %v1284 = vld [vmem:[%s5 + $0xc] sm:$0xf]
    %v1285 = vld [vmem:[%s5 + $0x10] sm:$0xf]
    %v1286 = vld [vmem:[%s5 + $0x14] sm:$0xf]
    %v1287 = vld [vmem:[%s5 + $0x18] sm:$0xf]
    %v1288 = vld [vmem:[%s5 + $0x1c] sm:$0xf]
    %v1289 = vld [vmem:[%s5 + $0x20] sm:$0xf]
    %v1290 = vld [vmem:[%s5 + $0x24] sm:$0xf]
    %v1291 = vld [vmem:[%s5 + $0x28] sm:$0xf]
    %v1292 = vld [vmem:[%s5 + $0x2c] sm:$0xf]
    %v1293 = vld [vmem:[%s5 + $0x30] sm:$0xf]
    %v1294 = vld [vmem:[%s5 + $0x34] sm:$0xf]
    %v1295 = vld [vmem:[%s5 + $0x38] sm:$0xf]
    %v1296 = vld [vmem:[%s5 + $0x3c] sm:$0xf]
    %v1297 = vld [vmem:[%s5 + $0x40] sm:$0xf]
    %v1298 = vld [vmem:[%s5 + $0x44] sm:$0xf]
    %v1299 = vld [vmem:[%s5 + $0x48] sm:$0xf]
    %v1300 = vld [vmem:[%s5 + $0x4c] sm:$0xf]
    %v1301 = vld [vmem:[%s5 + $0x50] sm:$0xf]
    %v1302 = vld [vmem:[%s5 + $0x54] sm:$0xf]
    %v1303 = vld [vmem:[%s5 + $0x58] sm:$0xf]
    %v1304 = vld [vmem:[%s5 + $0x5c] sm:$0xf]
    %v1305 = vld [vmem:[%s5 + $0x60] sm:$0xf]
    %v1306 = vld [vmem:[%s5 + $0x64] sm:$0xf]
    %v1307 = vld [vmem:[%s5 + $0x68] sm:$0xf]
    %v1308 = vld [vmem:[%s5 + $0x6c] sm:$0xf]
    %v1309 = vld [vmem:[%s5 + $0x70] sm:$0xf]
    %v1310 = vld [vmem:[%s5 + $0x74] sm:$0xf]
    %v1311 = vld [vmem:[%s5 + $0x78] sm:$0xf]
    %v1312 = vld [vmem:[%s5 + $0x7c] sm:$0xf]
    %v1345 = vunpack.c.l.b16 %v1281
    %v1346 = vunpack.c.l.b16 %v1282
    %v1347 = vunpack.c.l.b16 %v1283
    %v1348 = vunpack.c.l.b16 %v1284
    %v1349 = vunpack.c.l.b16 %v1285
    %v1350 = vunpack.c.l.b16 %v1286
    %v1351 = vunpack.c.l.b16 %v1287
    %v1352 = vunpack.c.l.b16 %v1288
    %v1353 = vunpack.c.l.b16 %v1289
    %v1354 = vunpack.c.l.b16 %v1290
    %v1355 = vunpack.c.l.b16 %v1291
    %v1356 = vunpack.c.l.b16 %v1292
    %v1357 = vunpack.c.l.b16 %v1293
    %v1358 = vunpack.c.l.b16 %v1294
    %v1359 = vunpack.c.l.b16 %v1295
    %v1360 = vunpack.c.l.b16 %v1296
    %v1361 = vunpack.c.l.b16 %v1297
    %v1362 = vunpack.c.l.b16 %v1298
    %v1363 = vunpack.c.l.b16 %v1299
    %v1364 = vunpack.c.l.b16 %v1300
    %v1365 = vunpack.c.l.b16 %v1301
    %v1366 = vunpack.c.l.b16 %v1302
    %v1367 = vunpack.c.l.b16 %v1303
    %v1368 = vunpack.c.l.b16 %v1304
    %v1369 = vunpack.c.l.b16 %v1305
    %v1370 = vunpack.c.l.b16 %v1306
    %v1371 = vunpack.c.l.b16 %v1307
    %v1372 = vunpack.c.l.b16 %v1308
    %v1373 = vunpack.c.l.b16 %v1309
    %v1374 = vunpack.c.l.b16 %v1310
    %v1375 = vunpack.c.l.b16 %v1311
    %v1376 = vunpack.c.l.b16 %v1312
    %v1377 = vpack.c.b16 %v1346, %v1345
    %v1378 = vpack.c.b16 %v1348, %v1347
    %v1379 = vpack.c.b16 %v1350, %v1349
    %v1380 = vpack.c.b16 %v1352, %v1351
    %v1381 = vpack.c.b16 %v1354, %v1353
    %v1382 = vpack.c.b16 %v1356, %v1355
    %v1383 = vpack.c.b16 %v1358, %v1357
    %v1384 = vpack.c.b16 %v1360, %v1359
    %v1385 = vpack.c.b16 %v1362, %v1361
    %v1386 = vpack.c.b16 %v1364, %v1363
    %v1387 = vpack.c.b16 %v1366, %v1365
    %v1388 = vpack.c.b16 %v1368, %v1367
    %v1389 = vpack.c.b16 %v1370, %v1369
    %v1390 = vpack.c.b16 %v1372, %v1371
    %v1391 = vpack.c.b16 %v1374, %v1373
    %v1392 = vpack.c.b16 %v1376, %v1375
    %1409 = vmatprep.subr.bf16.mxu0 0
    %1410 = vmatpush1.bf16.msra.mxu0 %v1377
    %1411 = vmatprep.subr.bf16.mxu0 0
    %1412 = vmatpush1.bf16.msra.mxu0 %v1378
    %1413 = vmatprep.subr.bf16.mxu0 0
    %1414 = vmatpush1.bf16.msra.mxu0 %v1379
    %1415 = vmatprep.subr.bf16.mxu0 0
    %1416 = vmatpush1.bf16.msra.mxu0 %v1380
    %1417 = vmatprep.subr.bf16.mxu0 0
    %1418 = vmatpush1.bf16.msra.mxu0 %v1381
    %1419 = vmatprep.subr.bf16.mxu0 0
    %1420 = vmatpush1.bf16.msra.mxu0 %v1382
    %1421 = vmatprep.subr.bf16.mxu0 0
    %1422 = vmatpush1.bf16.msra.mxu0 %v1383
    %1423 = vmatprep.subr.bf16.mxu0 0
    %1424 = vmatpush1.bf16.msra.mxu0 %v1384
    %1425 = vmatprep.subr.bf16.mxu0 0
    %1426 = vmatpush1.bf16.msra.mxu0 %v1385
    %1427 = vmatprep.subr.bf16.mxu0 0
    %1428 = vmatpush1.bf16.msra.mxu0 %v1386
    %1429 = vmatprep.subr.bf16.mxu0 0
    %1430 = vmatpush1.bf16.msra.mxu0 %v1387
    %1431 = vmatprep.subr.bf16.mxu0 0
    %1432 = vmatpush1.bf16.msra.mxu0 %v1388
    %1433 = vmatprep.subr.bf16.mxu0 0
    %1434 = vmatpush1.bf16.msra.mxu0 %v1389
    %1435 = vmatprep.subr.bf16.mxu0 0
    %1436 = vmatpush1.bf16.msra.mxu0 %v1390
    %1437 = vmatprep.subr.bf16.mxu0 0
    %1438 = vmatpush1.bf16.msra.mxu0 %v1391
    %1439 = vmatprep.subr.bf16.mxu0 0
    %1440 = vmatpush1.bf16.msra.mxu0 %v1392
    %1441 = vmatprep.mubr.bf16.mxu0 %v1280
    %1442 = vmatmul.mubr.bf16.gmra.mrb[0].mxu0 %v1279
    %v1443 = vpop.f32.mrb[0].mxu0
    %v1444 = vadd.f32 %v101, %v1443
    %v1445 = vpop.f32.mrb[0].mxu0
    %v1446 = vpop.f32.mrb[0].mxu0
    %v1447 = vadd.f32 %v101, %v1446
    %v1448 = vpop.f32.mrb[0].mxu0
    %1449 = vdwg.mxu0
    %v1450 = vmax.f32 %v1444, 0.0
    %v1451 = vmax.f32 %v1447, 0.0
    %v1452 = vld [vmem:[%s6] sm:$0xff]
    %v1453 = vld [vmem:[%s6 + $0x8] sm:$0xff]
    %v1454 = vld [vmem:[%s6 + $0x10] sm:$0xff]
    %v1455 = vld [vmem:[%s6 + $0x18] sm:$0xff]
    %v1456 = vld [vmem:[%s6 + $0x20] sm:$0xff]
    %v1457 = vld [vmem:[%s6 + $0x28] sm:$0xff]
    %v1458 = vld [vmem:[%s6 + $0x30] sm:$0xff]
    %v1459 = vld [vmem:[%s6 + $0x38] sm:$0xff]
    %v1460 = vld [vmem:[%s6 + $0x40] sm:$0xff]
    %v1461 = vld [vmem:[%s6 + $0x48] sm:$0xff]
    %v1462 = vld [vmem:[%s6 + $0x50] sm:$0xff]
    %v1463 = vld [vmem:[%s6 + $0x58] sm:$0xff]
    %v1464 = vld [vmem:[%s6 + $0x60] sm:$0xff]
    %v1465 = vld [vmem:[%s6 + $0x68] sm:$0xff]
    %v1466 = vld [vmem:[%s6 + $0x70] sm:$0xff]
    %v1467 = vld [vmem:[%s6 + $0x78] sm:$0xff]
    %1468 = vmatprep.subr.mxu0 0.0
    %1469 = vmatpush1.msra.mxu0 %v1452
    %1470 = vmatprep.subr.mxu0 0.0
    %1471 = vmatpush1.msra.mxu0 %v1453
    %1472 = vmatprep.subr.mxu0 0.0
    %1473 = vmatpush1.msra.mxu0 %v1454
    %1474 = vmatprep.subr.mxu0 0.0
    %1475 = vmatpush1.msra.mxu0 %v1455
    %1476 = vmatprep.subr.mxu0 0.0
    %1477 = vmatpush1.msra.mxu0 %v1456
    %1478 = vmatprep.subr.mxu0 0.0
    %1479 = vmatpush1.msra.mxu0 %v1457
    %1480 = vmatprep.subr.mxu0 0.0
    %1481 = vmatpush1.msra.mxu0 %v1458
    %1482 = vmatprep.subr.mxu0 0.0
    %1483 = vmatpush1.msra.mxu0 %v1459
    %1484 = vmatprep.subr.mxu0 0.0
    %1485 = vmatpush1.msra.mxu0 %v1460
    %1486 = vmatprep.subr.mxu0 0.0
    %1487 = vmatpush1.msra.mxu0 %v1461
    %1488 = vmatprep.subr.mxu0 0.0
    %1489 = vmatpush1.msra.mxu0 %v1462
    %1490 = vmatprep.subr.mxu0 0.0
    %1491 = vmatpush1.msra.mxu0 %v1463
    %1492 = vmatprep.subr.mxu0 0.0
    %1493 = vmatpush1.msra.mxu0 %v1464
    %1494 = vmatprep.subr.mxu0 0.0
    %1495 = vmatpush1.msra.mxu0 %v1465
    %1496 = vmatprep.subr.mxu0 0.0
    %1497 = vmatpush1.msra.mxu0 %v1466
    %1498 = vmatprep.subr.mxu0 0.0
    %1499 = vmatpush1.msra.mxu0 %v1467
    %1500 = vmatprep.subr.mxu0 0.0
    %1501 = vmatpush1.msra.mxu0 0.0
    %1502 = vmatprep.subr.mxu0 0.0
    %1503 = vmatpush1.msra.mxu0 0.0
    %1504 = vmatprep.subr.mxu0 0.0
    %1505 = vmatpush1.msra.mxu0 0.0
    %1506 = vmatprep.subr.mxu0 0.0
    %1507 = vmatpush1.msra.mxu0 0.0
    %1508 = vmatprep.subr.mxu0 0.0
    %1509 = vmatpush1.msra.mxu0 0.0
    %1510 = vmatprep.subr.mxu0 0.0
    %1511 = vmatpush1.msra.mxu0 0.0
    %1512 = vmatprep.subr.mxu0 0.0
    %1513 = vmatpush1.msra.mxu0 0.0
    %1514 = vmatprep.subr.mxu0 0.0
    %1515 = vmatpush1.msra.mxu0 0.0
    %1516 = vmatprep.subr.mxu0 0.0
    %1517 = vmatpush1.msra.mxu0 0.0
    %1518 = vmatprep.subr.mxu0 0.0
    %1519 = vmatpush1.msra.mxu0 0.0
    %1520 = vmatprep.subr.mxu0 0.0
    %1521 = vmatpush1.msra.mxu0 0.0
    %1522 = vmatprep.subr.mxu0 0.0
    %1523 = vmatpush1.msra.mxu0 0.0
    %1524 = vmatprep.subr.mxu0 0.0
    %1525 = vmatpush1.msra.mxu0 0.0
    %1526 = vmatprep.subr.mxu0 0.0
    %1527 = vmatpush1.msra.mxu0 0.0
    %1528 = vmatprep.subr.mxu0 0.0
    %1529 = vmatpush1.msra.mxu0 0.0
    %1530 = vmatprep.subr.mxu0 0.0
    %1531 = vmatpush1.msra.mxu0 0.0
    %1532 = vmatprep.mubr.f32.mxu0 0.0
    %1533 = vmatmul.mubr.f32.gmra.mrb[0].mxu0 %v1450
    %v1534 = vpop.f32.mrb[0].mxu0
    %v1535 = vadd.f32 %v102, %v1534
    %v1536 = vpop.f32.mrb[0].mxu0
    %1537 = vmatprep.mubr.f32.mxu0 0.0
    %1538 = vmatmul.mubr.f32.gmra.mrb[0].mxu0 %v1451
    %v1539 = vpop.f32.mrb[0].mxu0
    %v1540 = vadd.f32 %v102, %v1539
    %v1541 = vpop.f32.mrb[0].mxu0
    %1542 = vdwg.mxu0
    %v1543 = vxor.u32 %v1535, 2147483648
    %v1544 = vxor.u32 %v1540, 2147483648
    %v1545 = vmul.f32 %v1543, 1.442695
    %v1546 = vpow.pop %v1545
    %v1547 = vmul.f32 %v1544, 1.442695
    %v1548 = vpow.pop %v1547
    %v1549 = vadd.f32 %v1546, 1.0
    %v1550 = vadd.f32 %v1548, 1.0
    %v1551 = vrcp.pop %v1549
    %v1552 = vmul.f32 1.0, %v1551
    %v1553 = vrcp.pop %v1550
    %v1554 = vmul.f32 1.0, %v1553
    %v1555 = vmul.f32 %v1552, 0.5
    %v1556 = vmul.f32 %v1554, 0.5
    %v1557 = vadd.f32 %v1555, 0.1
    %v1558 = vadd.f32 %v1556, 0.1
    %v1559 = vmul.f32 %v1552, 0.08
    %v1560 = vmul.f32 %v1554, 0.08
    %v1561 = vadd.f32 %v1559, 0.01
    %v1562 = vadd.f32 %v1560, 0.01
    %v1563 = vmax.f32 %v1535, 0.0
    %v1564 = vmax.f32 %v1540, 0.0
    %vm1565 = vcmp.ne.f32.partialorder %v1535, %v1535
    %vm1566 = vcmp.ne.f32.partialorder %v1540, %v1540
    %v1567 = vadd.f32 %v1535, 0.0
    %v1568 = vadd.f32 %v1540, 0.0
    %v1569 = vand.u32 2147483647, %v1535
    %v1570 = vand.u32 2147483647, %v1540
    %v1571 = vsub.f32 0.0, %v1569
    %v1572 = vsub.f32 0.0, %v1570
    %v1573 = vmul.f32 %v1571, 1.442695
    %v1574 = vpow.pop %v1573
    %v1575 = vmul.f32 %v1572, 1.442695
    %v1576 = vpow.pop %v1575
    %v1577 = vadd.f32 %v1574, 1.0
    %v1578 = vlog2.pop %v1577
    %v1579 = vmul.f32 %v1578, 0.6931472
    %v1580 = vmul.f32 -0.5, %v1574
    %v1581 = vadd.f32 %v1580, 1.0
    %v1582 = vmul.f32 %v1581, %v1574
    %v1583 = vand.u32 2147483647, %v1574
    %vm1584 = vcmp.lt.f32.partialorder %v1583, 0.0004427343
    %v1585 = vsel %vm1584, %v1582, %v1579
    %v1586 = vadd.f32 %v1576, 1.0
    %v1587 = vlog2.pop %v1586
    %v1588 = vmul.f32 %v1587, 0.6931472
    %v1589 = vmul.f32 -0.5, %v1576
    %v1590 = vadd.f32 %v1589, 1.0
    %v1591 = vmul.f32 %v1590, %v1576
    %v1592 = vand.u32 2147483647, %v1576
    %vm1593 = vcmp.lt.f32.partialorder %v1592, 0.0004427343
    %v1594 = vsel %vm1593, %v1591, %v1588
    %v1595 = vadd.f32 %v1563, %v1585
    %v1596 = vadd.f32 %v1564, %v1594
    %v1597 = vsel %vm1565, %v1567, %v1595
    %v1598 = vsel %vm1566, %v1568, %v1596
    %v1599 = vadd.f32 %v1597, 10.0
    %v1600 = vadd.f32 %v1598, 10.0
    %v1602 = vlaneseq
    %v1603 = vshrl.u32 %v1602, 7
    %v1604 = vsub.s32 0, %v1603
    %v1605 = vrot.slane %v111, %v1604
    %v1606 = vlaneseq
    %v1607 = vshrl.u32 %v1606, 7
    %v1608 = vsub.s32 1, %v1607
    %v1609 = vrot.slane %v111, %v1608
    %v1612 = vmul.f32 %v121, %v1605
    %v1613 = vmul.f32 %v121, %v1609
    %v1614 = vmul.f32 %v126, %v1605
    %v1615 = vmul.f32 %v126, %v1609
    %1617 = vset.pattern.permute.xlu0 0
    %1618 = vperm.xlu0 %1617, %v1557
    %v1619 = vpop.permute.xlu0 %1618
    %1622 = vset.pattern.permute.xlu0 0
    %1623 = vperm.xlu0 %1622, %v1558
    %v1624 = vpop.permute.xlu0 %1623
    %v1627 = vlaneseq
    %v1628 = vshrl.u32 %v1627, 7
    %v1629 = vsub.s32 0, %v1628
    %v1630 = vrot.slane %v113, %v1629
    %v1631 = vlaneseq
    %v1632 = vshrl.u32 %v1631, 7
    %v1633 = vsub.s32 1, %v1632
    %v1634 = vrot.slane %v113, %v1633
    %v1637 = vmul.f32 %v1619, %v1630
    %v1638 = vmul.f32 %v1619, %v1634
    %v1639 = vmul.f32 %v1624, %v1630
    %v1640 = vmul.f32 %v1624, %v1634
    %v1641 = vadd.f32 %v1612, %v1637
    %v1642 = vadd.f32 %v1613, %v1638
    %v1643 = vadd.f32 %v1614, %v1639
    %v1644 = vadd.f32 %v1615, %v1640
    %1646 = vset.pattern.permute.xlu0 1
    %1647 = vperm.xlu0 %1646, %v1561
    %v1648 = vpop.permute.xlu0 %1647
    %1651 = vset.pattern.permute.xlu0 1
    %1652 = vperm.xlu0 %1651, %v1562
    %v1653 = vpop.permute.xlu0 %1652
    %v1656 = vlaneseq
    %v1657 = vshrl.u32 %v1656, 7
    %v1658 = vsub.s32 0, %v1657
    %v1659 = vrot.slane %v115, %v1658
    %v1660 = vlaneseq
    %v1661 = vshrl.u32 %v1660, 7
    %v1662 = vsub.s32 1, %v1661
    %v1663 = vrot.slane %v115, %v1662
    %v1666 = vmul.f32 %v1648, %v1659
    %v1667 = vmul.f32 %v1648, %v1663
    %v1668 = vmul.f32 %v1653, %v1659
    %v1669 = vmul.f32 %v1653, %v1663
    %v1670 = vadd.f32 %v1641, %v1666
    %v1671 = vadd.f32 %v1642, %v1667
    %v1672 = vadd.f32 %v1643, %v1668
    %v1673 = vadd.f32 %v1644, %v1669
    %1675 = vset.pattern.permute.xlu0 2
    %1676 = vperm.xlu0 %1675, %v1599
    %v1677 = vpop.permute.xlu0 %1676
    %1680 = vset.pattern.permute.xlu0 2
    %1681 = vperm.xlu0 %1680, %v1600
    %v1682 = vpop.permute.xlu0 %1681
    %v1685 = vlaneseq
    %v1686 = vshrl.u32 %v1685, 7
    %v1687 = vsub.s32 0, %v1686
    %v1688 = vrot.slane %v117, %v1687
    %v1689 = vlaneseq
    %v1690 = vshrl.u32 %v1689, 7
    %v1691 = vsub.s32 1, %v1690
    %v1692 = vrot.slane %v117, %v1691
    %v1695 = vmul.f32 %v1677, %v1688
    %v1696 = vmul.f32 %v1677, %v1692
    %v1697 = vmul.f32 %v1682, %v1688
    %v1698 = vmul.f32 %v1682, %v1692
    %v1699 = vadd.f32 %v1670, %v1695
    %v1700 = vadd.f32 %v1671, %v1696
    %v1701 = vadd.f32 %v1672, %v1697
    %v1702 = vadd.f32 %v1673, %v1698
    %v1704 = vlaneseq
    %v1705 = vshrl.u32 %v1704, 7
    %v1706 = vsub.s32 0, %v1705
    %v1707 = vrot.slane %v104, %v1706
    %v1708 = vlaneseq
    %v1709 = vshrl.u32 %v1708, 7
    %v1710 = vsub.s32 1, %v1709
    %v1711 = vrot.slane %v104, %v1710
    %v1714 = vadd.f32 %v1699, %v1707
    %v1715 = vadd.f32 %v1700, %v1711
    %v1716 = vadd.f32 %v1701, %v1707
    %v1717 = vadd.f32 %v1702, %v1711
    %v1718 = vmax.f32 %v1714, 0.0
    %v1719 = vmax.f32 %v1715, 0.0
    %v1720 = vmax.f32 %v1716, 0.0
    %v1721 = vmax.f32 %v1717, 0.0
    %v1722 = vpack.c.bf16 %v1720, %v1718
    %v1723 = vpack.c.bf16 %v1721, %v1719
    %v1724 = vld [vmem:[#allocation6] sm:$0xff]
    %v1725 = vld [vmem:[#allocation6 + $0x8] sm:$0xff]
    %v1726 = vld [vmem:[#allocation6 + $0x10] sm:$0xff]
    %v1727 = vld [vmem:[#allocation6 + $0x18] sm:$0xff]
    %v1728 = vld [vmem:[#allocation6 + $0x20] sm:$0xff]
    %v1729 = vld [vmem:[#allocation6 + $0x28] sm:$0xff]
    %v1730 = vld [vmem:[#allocation6 + $0x30] sm:$0xff]
    %v1731 = vld [vmem:[#allocation6 + $0x38] sm:$0xff]
    %v1732 = vld [vmem:[#allocation6 + $0x40] sm:$0xff]
    %v1733 = vld [vmem:[#allocation6 + $0x48] sm:$0xff]
    %v1734 = vld [vmem:[#allocation6 + $0x50] sm:$0xff]
    %v1735 = vld [vmem:[#allocation6 + $0x58] sm:$0xff]
    %v1736 = vld [vmem:[#allocation6 + $0x60] sm:$0xff]
    %v1737 = vld [vmem:[#allocation6 + $0x68] sm:$0xff]
    %v1738 = vld [vmem:[#allocation6 + $0x70] sm:$0xff]
    %v1739 = vld [vmem:[#allocation6 + $0x78] sm:$0xff]
    %v1740 = vld [vmem:[#allocation6 + $0x80] sm:$0xff]
    %v1741 = vld [vmem:[#allocation6 + $0x88] sm:$0xff]
    %v1742 = vld [vmem:[#allocation6 + $0x90] sm:$0xff]
    %v1743 = vld [vmem:[#allocation6 + $0x98] sm:$0xff]
    %v1744 = vld [vmem:[#allocation6 + $0xa0] sm:$0xff]
    %v1745 = vld [vmem:[#allocation6 + $0xa8] sm:$0xff]
    %v1746 = vld [vmem:[#allocation6 + $0xb0] sm:$0xff]
    %v1747 = vld [vmem:[#allocation6 + $0xb8] sm:$0xff]
    %v1748 = vld [vmem:[#allocation6 + $0xc0] sm:$0xff]
    %v1749 = vld [vmem:[#allocation6 + $0xc8] sm:$0xff]
    %v1750 = vld [vmem:[#allocation6 + $0xd0] sm:$0xff]
    %v1751 = vld [vmem:[#allocation6 + $0xd8] sm:$0xff]
    %v1752 = vld [vmem:[#allocation6 + $0xe0] sm:$0xff]
    %v1753 = vld [vmem:[#allocation6 + $0xe8] sm:$0xff]
    %v1754 = vld [vmem:[#allocation6 + $0xf0] sm:$0xff]
    %v1755 = vld [vmem:[#allocation6 + $0xf8] sm:$0xff]
    %v1756 = vld [vmem:[#allocation6 + $0x100] sm:$0xff]
    %v1757 = vld [vmem:[#allocation6 + $0x108] sm:$0xff]
    %v1758 = vld [vmem:[#allocation6 + $0x110] sm:$0xff]
    %v1759 = vld [vmem:[#allocation6 + $0x118] sm:$0xff]
    %v1760 = vld [vmem:[#allocation6 + $0x120] sm:$0xff]
    %v1761 = vld [vmem:[#allocation6 + $0x128] sm:$0xff]
    %v1762 = vld [vmem:[#allocation6 + $0x130] sm:$0xff]
    %v1763 = vld [vmem:[#allocation6 + $0x138] sm:$0xff]
    %v1764 = vld [vmem:[#allocation6 + $0x140] sm:$0xff]
    %v1765 = vld [vmem:[#allocation6 + $0x148] sm:$0xff]
    %v1766 = vld [vmem:[#allocation6 + $0x150] sm:$0xff]
    %v1767 = vld [vmem:[#allocation6 + $0x158] sm:$0xff]
    %v1768 = vld [vmem:[#allocation6 + $0x160] sm:$0xff]
    %v1769 = vld [vmem:[#allocation6 + $0x168] sm:$0xff]
    %v1770 = vld [vmem:[#allocation6 + $0x170] sm:$0xff]
    %v1771 = vld [vmem:[#allocation6 + $0x178] sm:$0xff]
    %v1772 = vld [vmem:[#allocation6 + $0x180] sm:$0xff]
    %v1773 = vld [vmem:[#allocation6 + $0x188] sm:$0xff]
    %v1774 = vld [vmem:[#allocation6 + $0x190] sm:$0xff]
    %v1775 = vld [vmem:[#allocation6 + $0x198] sm:$0xff]
    %v1776 = vld [vmem:[#allocation6 + $0x1a0] sm:$0xff]
    %v1777 = vld [vmem:[#allocation6 + $0x1a8] sm:$0xff]
    %v1778 = vld [vmem:[#allocation6 + $0x1b0] sm:$0xff]
    %v1779 = vld [vmem:[#allocation6 + $0x1b8] sm:$0xff]
    %v1780 = vld [vmem:[#allocation6 + $0x1c0] sm:$0xff]
    %v1781 = vld [vmem:[#allocation6 + $0x1c8] sm:$0xff]
    %v1782 = vld [vmem:[#allocation6 + $0x1d0] sm:$0xff]
    %v1783 = vld [vmem:[#allocation6 + $0x1d8] sm:$0xff]
    %v1784 = vld [vmem:[#allocation6 + $0x1e0] sm:$0xff]
    %v1785 = vld [vmem:[#allocation6 + $0x1e8] sm:$0xff]
    %v1786 = vld [vmem:[#allocation6 + $0x1f0] sm:$0xff]
    %v1787 = vld [vmem:[#allocation6 + $0x1f8] sm:$0xff]
    %v1789 = vlaneseq
    %v1790 = vshrl.u32 %v1789, 7
    %v1791 = vsub.s32 0, %v1790
    %v1792 = vrot.slane %v106, %v1791
    %v1793 = vlaneseq
    %v1794 = vshrl.u32 %v1793, 7
    %v1795 = vsub.s32 1, %v1794
    %v1796 = vrot.slane %v106, %v1795
    %v1797 = vlaneseq
    %v1798 = vshrl.u32 %v1797, 7
    %v1799 = vsub.s32 2, %v1798
    %v1800 = vrot.slane %v106, %v1799
    %v1801 = vlaneseq
    %v1802 = vshrl.u32 %v1801, 7
    %v1803 = vsub.s32 3, %v1802
    %v1804 = vrot.slane %v106, %v1803
    %v1873 = vunpack.c.l.b16 %v1724
    %v1874 = vunpack.c.h.b16 %v1724
    %v1875 = vunpack.c.l.b16 %v1725
    %v1876 = vunpack.c.h.b16 %v1725
    %v1877 = vunpack.c.l.b16 %v1726
    %v1878 = vunpack.c.h.b16 %v1726
    %v1879 = vunpack.c.l.b16 %v1727
    %v1880 = vunpack.c.h.b16 %v1727
    %v1881 = vunpack.c.l.b16 %v1728
    %v1882 = vunpack.c.h.b16 %v1728
    %v1883 = vunpack.c.l.b16 %v1729
    %v1884 = vunpack.c.h.b16 %v1729
    %v1885 = vunpack.c.l.b16 %v1730
    %v1886 = vunpack.c.h.b16 %v1730
    %v1887 = vunpack.c.l.b16 %v1731
    %v1888 = vunpack.c.h.b16 %v1731
    %v1889 = vunpack.c.l.b16 %v1732
    %v1890 = vunpack.c.h.b16 %v1732
    %v1891 = vunpack.c.l.b16 %v1733
    %v1892 = vunpack.c.h.b16 %v1733
    %v1893 = vunpack.c.l.b16 %v1734
    %v1894 = vunpack.c.h.b16 %v1734
    %v1895 = vunpack.c.l.b16 %v1735
    %v1896 = vunpack.c.h.b16 %v1735
    %v1897 = vunpack.c.l.b16 %v1736
    %v1898 = vunpack.c.h.b16 %v1736
    %v1899 = vunpack.c.l.b16 %v1737
    %v1900 = vunpack.c.h.b16 %v1737
    %v1901 = vunpack.c.l.b16 %v1738
    %v1902 = vunpack.c.h.b16 %v1738
    %v1903 = vunpack.c.l.b16 %v1739
    %v1904 = vunpack.c.h.b16 %v1739
    %v1905 = vunpack.c.l.b16 %v1740
    %v1906 = vunpack.c.h.b16 %v1740
    %v1907 = vunpack.c.l.b16 %v1741
    %v1908 = vunpack.c.h.b16 %v1741
    %v1909 = vunpack.c.l.b16 %v1742
    %v1910 = vunpack.c.h.b16 %v1742
    %v1911 = vunpack.c.l.b16 %v1743
    %v1912 = vunpack.c.h.b16 %v1743
    %v1913 = vunpack.c.l.b16 %v1744
    %v1914 = vunpack.c.h.b16 %v1744
    %v1915 = vunpack.c.l.b16 %v1745
    %v1916 = vunpack.c.h.b16 %v1745
    %v1917 = vunpack.c.l.b16 %v1746
    %v1918 = vunpack.c.h.b16 %v1746
    %v1919 = vunpack.c.l.b16 %v1747
    %v1920 = vunpack.c.h.b16 %v1747
    %v1921 = vunpack.c.l.b16 %v1748
    %v1922 = vunpack.c.h.b16 %v1748
    %v1923 = vunpack.c.l.b16 %v1749
    %v1924 = vunpack.c.h.b16 %v1749
    %v1925 = vunpack.c.l.b16 %v1750
    %v1926 = vunpack.c.h.b16 %v1750
    %v1927 = vunpack.c.l.b16 %v1751
    %v1928 = vunpack.c.h.b16 %v1751
    %v1929 = vunpack.c.l.b16 %v1752
    %v1930 = vunpack.c.h.b16 %v1752
    %v1931 = vunpack.c.l.b16 %v1753
    %v1932 = vunpack.c.h.b16 %v1753
    %v1933 = vunpack.c.l.b16 %v1754
    %v1934 = vunpack.c.h.b16 %v1754
    %v1935 = vunpack.c.l.b16 %v1755
    %v1936 = vunpack.c.h.b16 %v1755
    %v1937 = vunpack.c.l.b16 %v1756
    %v1938 = vunpack.c.h.b16 %v1756
    %v1939 = vunpack.c.l.b16 %v1757
    %v1940 = vunpack.c.h.b16 %v1757
    %v1941 = vunpack.c.l.b16 %v1758
    %v1942 = vunpack.c.h.b16 %v1758
    %v1943 = vunpack.c.l.b16 %v1759
    %v1944 = vunpack.c.h.b16 %v1759
    %v1945 = vunpack.c.l.b16 %v1760
    %v1946 = vunpack.c.h.b16 %v1760
    %v1947 = vunpack.c.l.b16 %v1761
    %v1948 = vunpack.c.h.b16 %v1761
    %v1949 = vunpack.c.l.b16 %v1762
    %v1950 = vunpack.c.h.b16 %v1762
    %v1951 = vunpack.c.l.b16 %v1763
    %v1952 = vunpack.c.h.b16 %v1763
    %v1953 = vunpack.c.l.b16 %v1764
    %v1954 = vunpack.c.h.b16 %v1764
    %v1955 = vunpack.c.l.b16 %v1765
    %v1956 = vunpack.c.h.b16 %v1765
    %v1957 = vunpack.c.l.b16 %v1766
    %v1958 = vunpack.c.h.b16 %v1766
    %v1959 = vunpack.c.l.b16 %v1767
    %v1960 = vunpack.c.h.b16 %v1767
    %v1961 = vunpack.c.l.b16 %v1768
    %v1962 = vunpack.c.h.b16 %v1768
    %v1963 = vunpack.c.l.b16 %v1769
    %v1964 = vunpack.c.h.b16 %v1769
    %v1965 = vunpack.c.l.b16 %v1770
    %v1966 = vunpack.c.h.b16 %v1770
    %v1967 = vunpack.c.l.b16 %v1771
    %v1968 = vunpack.c.h.b16 %v1771
    %v1969 = vunpack.c.l.b16 %v1772
    %v1970 = vunpack.c.h.b16 %v1772
    %v1971 = vunpack.c.l.b16 %v1773
    %v1972 = vunpack.c.h.b16 %v1773
    %v1973 = vunpack.c.l.b16 %v1774
    %v1974 = vunpack.c.h.b16 %v1774
    %v1975 = vunpack.c.l.b16 %v1775
    %v1976 = vunpack.c.h.b16 %v1775
    %v1977 = vunpack.c.l.b16 %v1776
    %v1978 = vunpack.c.h.b16 %v1776
    %v1979 = vunpack.c.l.b16 %v1777
    %v1980 = vunpack.c.h.b16 %v1777
    %v1981 = vunpack.c.l.b16 %v1778
    %v1982 = vunpack.c.h.b16 %v1778
    %v1983 = vunpack.c.l.b16 %v1779
    %v1984 = vunpack.c.h.b16 %v1779
    %v1985 = vunpack.c.l.b16 %v1780
    %v1986 = vunpack.c.h.b16 %v1780
    %v1987 = vunpack.c.l.b16 %v1781
    %v1988 = vunpack.c.h.b16 %v1781
    %v1989 = vunpack.c.l.b16 %v1782
    %v1990 = vunpack.c.h.b16 %v1782
    %v1991 = vunpack.c.l.b16 %v1783
    %v1992 = vunpack.c.h.b16 %v1783
    %v1993 = vunpack.c.l.b16 %v1784
    %v1994 = vunpack.c.h.b16 %v1784
    %v1995 = vunpack.c.l.b16 %v1785
    %v1996 = vunpack.c.h.b16 %v1785
    %v1997 = vunpack.c.l.b16 %v1786
    %v1998 = vunpack.c.h.b16 %v1786
    %v1999 = vunpack.c.l.b16 %v1787
    %v2000 = vunpack.c.h.b16 %v1787
    %v2001 = vpack.c.b16 %v1877, %v1873
    %v2002 = vpack.c.b16 %v1878, %v1874
    %v2003 = vpack.c.b16 %v1879, %v1875
    %v2004 = vpack.c.b16 %v1880, %v1876
    %v2005 = vpack.c.b16 %v1885, %v1881
    %v2006 = vpack.c.b16 %v1886, %v1882
    %v2007 = vpack.c.b16 %v1887, %v1883
    %v2008 = vpack.c.b16 %v1888, %v1884
    %v2009 = vpack.c.b16 %v1893, %v1889
    %v2010 = vpack.c.b16 %v1894, %v1890
    %v2011 = vpack.c.b16 %v1895, %v1891
    %v2012 = vpack.c.b16 %v1896, %v1892
    %v2013 = vpack.c.b16 %v1901, %v1897
    %v2014 = vpack.c.b16 %v1902, %v1898
    %v2015 = vpack.c.b16 %v1903, %v1899
    %v2016 = vpack.c.b16 %v1904, %v1900
    %v2017 = vpack.c.b16 %v1909, %v1905
    %v2018 = vpack.c.b16 %v1910, %v1906
    %v2019 = vpack.c.b16 %v1911, %v1907
    %v2020 = vpack.c.b16 %v1912, %v1908
    %v2021 = vpack.c.b16 %v1917, %v1913
    %v2022 = vpack.c.b16 %v1918, %v1914
    %v2023 = vpack.c.b16 %v1919, %v1915
    %v2024 = vpack.c.b16 %v1920, %v1916
    %v2025 = vpack.c.b16 %v1925, %v1921
    %v2026 = vpack.c.b16 %v1926, %v1922
    %v2027 = vpack.c.b16 %v1927, %v1923
    %v2028 = vpack.c.b16 %v1928, %v1924
    %v2029 = vpack.c.b16 %v1933, %v1929
    %v2030 = vpack.c.b16 %v1934, %v1930
    %v2031 = vpack.c.b16 %v1935, %v1931
    %v2032 = vpack.c.b16 %v1936, %v1932
    %v2033 = vpack.c.b16 %v1941, %v1937
    %v2034 = vpack.c.b16 %v1942, %v1938
    %v2035 = vpack.c.b16 %v1943, %v1939
    %v2036 = vpack.c.b16 %v1944, %v1940
    %v2037 = vpack.c.b16 %v1949, %v1945
    %v2038 = vpack.c.b16 %v1950, %v1946
    %v2039 = vpack.c.b16 %v1951, %v1947
    %v2040 = vpack.c.b16 %v1952, %v1948
    %v2041 = vpack.c.b16 %v1957, %v1953
    %v2042 = vpack.c.b16 %v1958, %v1954
    %v2043 = vpack.c.b16 %v1959, %v1955
    %v2044 = vpack.c.b16 %v1960, %v1956
    %v2045 = vpack.c.b16 %v1965, %v1961
    %v2046 = vpack.c.b16 %v1966, %v1962
    %v2047 = vpack.c.b16 %v1967, %v1963
    %v2048 = vpack.c.b16 %v1968, %v1964
    %v2049 = vpack.c.b16 %v1973, %v1969
    %v2050 = vpack.c.b16 %v1974, %v1970
    %v2051 = vpack.c.b16 %v1975, %v1971
    %v2052 = vpack.c.b16 %v1976, %v1972
    %v2053 = vpack.c.b16 %v1981, %v1977
    %v2054 = vpack.c.b16 %v1982, %v1978
    %v2055 = vpack.c.b16 %v1983, %v1979
    %v2056 = vpack.c.b16 %v1984, %v1980
    %v2057 = vpack.c.b16 %v1989, %v1985
    %v2058 = vpack.c.b16 %v1990, %v1986
    %v2059 = vpack.c.b16 %v1991, %v1987
    %v2060 = vpack.c.b16 %v1992, %v1988
    %v2061 = vpack.c.b16 %v1997, %v1993
    %v2062 = vpack.c.b16 %v1998, %v1994
    %v2063 = vpack.c.b16 %v1999, %v1995
    %v2064 = vpack.c.b16 %v2000, %v1996
    %2129 = vmatprep.subr.bf16.mxu0 %v2002
    %2130 = vmatpush1.bf16.msra.mxu0 %v2001
    %2131 = vmatprep.subr.bf16.mxu0 %v2006
    %2132 = vmatpush1.bf16.msra.mxu0 %v2005
    %2133 = vmatprep.subr.bf16.mxu0 %v2010
    %2134 = vmatpush1.bf16.msra.mxu0 %v2009
    %2135 = vmatprep.subr.bf16.mxu0 %v2014
    %2136 = vmatpush1.bf16.msra.mxu0 %v2013
    %2137 = vmatprep.subr.bf16.mxu0 %v2018
    %2138 = vmatpush1.bf16.msra.mxu0 %v2017
    %2139 = vmatprep.subr.bf16.mxu0 %v2022
    %2140 = vmatpush1.bf16.msra.mxu0 %v2021
    %2141 = vmatprep.subr.bf16.mxu0 %v2026
    %2142 = vmatpush1.bf16.msra.mxu0 %v2025
    %2143 = vmatprep.subr.bf16.mxu0 %v2030
    %2144 = vmatpush1.bf16.msra.mxu0 %v2029
    %2145 = vmatprep.subr.bf16.mxu0 %v2034
    %2146 = vmatpush1.bf16.msra.mxu0 %v2033
    %2147 = vmatprep.subr.bf16.mxu0 %v2038
    %2148 = vmatpush1.bf16.msra.mxu0 %v2037
    %2149 = vmatprep.subr.bf16.mxu0 %v2042
    %2150 = vmatpush1.bf16.msra.mxu0 %v2041
    %2151 = vmatprep.subr.bf16.mxu0 %v2046
    %2152 = vmatpush1.bf16.msra.mxu0 %v2045
    %2153 = vmatprep.subr.bf16.mxu0 %v2050
    %2154 = vmatpush1.bf16.msra.mxu0 %v2049
    %2155 = vmatprep.subr.bf16.mxu0 %v2054
    %2156 = vmatpush1.bf16.msra.mxu0 %v2053
    %2157 = vmatprep.subr.bf16.mxu0 %v2058
    %2158 = vmatpush1.bf16.msra.mxu0 %v2057
    %2159 = vmatprep.subr.bf16.mxu0 %v2062
    %2160 = vmatpush1.bf16.msra.mxu0 %v2061
    %2161 = vmatprep.mubr.bf16.mxu0 %v1723
    %2162 = vmatmul.mubr.bf16.gmra.mrb[0].mxu0 %v1722
    %v2163 = vpop.f32.mrb[0].mxu0
    %v2164 = vadd.f32 %v1792, %v2163
    %v2165 = vpop.f32.mrb[0].mxu0
    %v2166 = vadd.f32 %v1796, %v2165
    %v2167 = vpop.f32.mrb[0].mxu0
    %v2168 = vadd.f32 %v1792, %v2167
    %v2169 = vpop.f32.mrb[0].mxu0
    %v2170 = vadd.f32 %v1796, %v2169
    %2171 = vdwg.mxu0
    %2172 = vmatprep.subr.bf16.mxu0 %v2004
    %2173 = vmatpush1.bf16.msra.mxu0 %v2003
    %2174 = vmatprep.subr.bf16.mxu0 %v2008
    %2175 = vmatpush1.bf16.msra.mxu0 %v2007
    %2176 = vmatprep.subr.bf16.mxu0 %v2012
    %2177 = vmatpush1.bf16.msra.mxu0 %v2011
    %2178 = vmatprep.subr.bf16.mxu0 %v2016
    %2179 = vmatpush1.bf16.msra.mxu0 %v2015
    %2180 = vmatprep.subr.bf16.mxu0 %v2020
    %2181 = vmatpush1.bf16.msra.mxu0 %v2019
    %2182 = vmatprep.subr.bf16.mxu0 %v2024
    %2183 = vmatpush1.bf16.msra.mxu0 %v2023
    %2184 = vmatprep.subr.bf16.mxu0 %v2028
    %2185 = vmatpush1.bf16.msra.mxu0 %v2027
    %2186 = vmatprep.subr.bf16.mxu0 %v2032
    %2187 = vmatpush1.bf16.msra.mxu0 %v2031
    %2188 = vmatprep.subr.bf16.mxu0 %v2036
    %2189 = vmatpush1.bf16.msra.mxu0 %v2035
    %2190 = vmatprep.subr.bf16.mxu0 %v2040
    %2191 = vmatpush1.bf16.msra.mxu0 %v2039
    %2192 = vmatprep.subr.bf16.mxu0 %v2044
    %2193 = vmatpush1.bf16.msra.mxu0 %v2043
    %2194 = vmatprep.subr.bf16.mxu0 %v2048
    %2195 = vmatpush1.bf16.msra.mxu0 %v2047
    %2196 = vmatprep.subr.bf16.mxu0 %v2052
    %2197 = vmatpush1.bf16.msra.mxu0 %v2051
    %2198 = vmatprep.subr.bf16.mxu0 %v2056
    %2199 = vmatpush1.bf16.msra.mxu0 %v2055
    %2200 = vmatprep.subr.bf16.mxu0 %v2060
    %2201 = vmatpush1.bf16.msra.mxu0 %v2059
    %2202 = vmatprep.subr.bf16.mxu0 %v2064
    %2203 = vmatpush1.bf16.msra.mxu0 %v2063
    %2204 = vmatprep.mubr.bf16.mxu0 %v1723
    %2205 = vmatmul.mubr.bf16.gmra.mrb[0].mxu0 %v1722
    %v2206 = vpop.f32.mrb[0].mxu0
    %v2207 = vadd.f32 %v1800, %v2206
    %v2208 = vpop.f32.mrb[0].mxu0
    %v2209 = vadd.f32 %v1804, %v2208
    %v2210 = vpop.f32.mrb[0].mxu0
    %v2211 = vadd.f32 %v1800, %v2210
    %v2212 = vpop.f32.mrb[0].mxu0
    %v2213 = vadd.f32 %v1804, %v2212
    %2214 = vdwg.mxu0
    %v2215 = vmax.f32 %v2164, 0.0
    %v2216 = vmax.f32 %v2166, 0.0
    %v2217 = vmax.f32 %v2207, 0.0
    %v2218 = vmax.f32 %v2209, 0.0
    %v2219 = vmax.f32 %v2168, 0.0
    %v2220 = vmax.f32 %v2170, 0.0
    %v2221 = vmax.f32 %v2211, 0.0
    %v2222 = vmax.f32 %v2213, 0.0
    %v2223 = vpack.c.bf16 %v2219, %v2215
    %v2224 = vpack.c.bf16 %v2220, %v2216
    %v2225 = vpack.c.bf16 %v2221, %v2217
    %v2226 = vpack.c.bf16 %v2222, %v2218
    %v2227 = vld [vmem:[#allocation7] sm:$0xff]
    %v2228 = vld [vmem:[#allocation7 + $0x8] sm:$0xff]
    %v2229 = vld [vmem:[#allocation7 + $0x10] sm:$0xff]
    %v2230 = vld [vmem:[#allocation7 + $0x18] sm:$0xff]
    %v2231 = vld [vmem:[#allocation7 + $0x20] sm:$0xff]
    %v2232 = vld [vmem:[#allocation7 + $0x28] sm:$0xff]
    %v2233 = vld [vmem:[#allocation7 + $0x30] sm:$0xff]
    %v2234 = vld [vmem:[#allocation7 + $0x38] sm:$0xff]
    %v2235 = vld [vmem:[#allocation7 + $0x40] sm:$0xff]
    %v2236 = vld [vmem:[#allocation7 + $0x48] sm:$0xff]
    %v2237 = vld [vmem:[#allocation7 + $0x50] sm:$0xff]
    %v2238 = vld [vmem:[#allocation7 + $0x58] sm:$0xff]
    %v2239 = vld [vmem:[#allocation7 + $0x60] sm:$0xff]
    %v2240 = vld [vmem:[#allocation7 + $0x68] sm:$0xff]
    %v2241 = vld [vmem:[#allocation7 + $0x70] sm:$0xff]
    %v2242 = vld [vmem:[#allocation7 + $0x78] sm:$0xff]
    %v2243 = vld [vmem:[#allocation7 + $0x80] sm:$0xff]
    %v2244 = vld [vmem:[#allocation7 + $0x88] sm:$0xff]
    %v2245 = vld [vmem:[#allocation7 + $0x90] sm:$0xff]
    %v2246 = vld [vmem:[#allocation7 + $0x98] sm:$0xff]
    %v2247 = vld [vmem:[#allocation7 + $0xa0] sm:$0xff]
    %v2248 = vld [vmem:[#allocation7 + $0xa8] sm:$0xff]
    %v2249 = vld [vmem:[#allocation7 + $0xb0] sm:$0xff]
    %v2250 = vld [vmem:[#allocation7 + $0xb8] sm:$0xff]
    %v2251 = vld [vmem:[#allocation7 + $0xc0] sm:$0xff]
    %v2252 = vld [vmem:[#allocation7 + $0xc8] sm:$0xff]
    %v2253 = vld [vmem:[#allocation7 + $0xd0] sm:$0xff]
    %v2254 = vld [vmem:[#allocation7 + $0xd8] sm:$0xff]
    %v2255 = vld [vmem:[#allocation7 + $0xe0] sm:$0xff]
    %v2256 = vld [vmem:[#allocation7 + $0xe8] sm:$0xff]
    %v2257 = vld [vmem:[#allocation7 + $0xf0] sm:$0xff]
    %v2258 = vld [vmem:[#allocation7 + $0xf8] sm:$0xff]
    %v2259 = vld [vmem:[#allocation7 + $0x100] sm:$0xff]
    %v2260 = vld [vmem:[#allocation7 + $0x108] sm:$0xff]
    %v2261 = vld [vmem:[#allocation7 + $0x110] sm:$0xff]
    %v2262 = vld [vmem:[#allocation7 + $0x118] sm:$0xff]
    %v2263 = vld [vmem:[#allocation7 + $0x120] sm:$0xff]
    %v2264 = vld [vmem:[#allocation7 + $0x128] sm:$0xff]
    %v2265 = vld [vmem:[#allocation7 + $0x130] sm:$0xff]
    %v2266 = vld [vmem:[#allocation7 + $0x138] sm:$0xff]
    %v2267 = vld [vmem:[#allocation7 + $0x140] sm:$0xff]
    %v2268 = vld [vmem:[#allocation7 + $0x148] sm:$0xff]
    %v2269 = vld [vmem:[#allocation7 + $0x150] sm:$0xff]
    %v2270 = vld [vmem:[#allocation7 + $0x158] sm:$0xff]
    %v2271 = vld [vmem:[#allocation7 + $0x160] sm:$0xff]
    %v2272 = vld [vmem:[#allocation7 + $0x168] sm:$0xff]
    %v2273 = vld [vmem:[#allocation7 + $0x170] sm:$0xff]
    %v2274 = vld [vmem:[#allocation7 + $0x178] sm:$0xff]
    %v2275 = vld [vmem:[#allocation7 + $0x180] sm:$0xff]
    %v2276 = vld [vmem:[#allocation7 + $0x188] sm:$0xff]
    %v2277 = vld [vmem:[#allocation7 + $0x190] sm:$0xff]
    %v2278 = vld [vmem:[#allocation7 + $0x198] sm:$0xff]
    %v2279 = vld [vmem:[#allocation7 + $0x1a0] sm:$0xff]
    %v2280 = vld [vmem:[#allocation7 + $0x1a8] sm:$0xff]
    %v2281 = vld [vmem:[#allocation7 + $0x1b0] sm:$0xff]
    %v2282 = vld [vmem:[#allocation7 + $0x1b8] sm:$0xff]
    %v2283 = vld [vmem:[#allocation7 + $0x1c0] sm:$0xff]
    %v2284 = vld [vmem:[#allocation7 + $0x1c8] sm:$0xff]
    %v2285 = vld [vmem:[#allocation7 + $0x1d0] sm:$0xff]
    %v2286 = vld [vmem:[#allocation7 + $0x1d8] sm:$0xff]
    %v2287 = vld [vmem:[#allocation7 + $0x1e0] sm:$0xff]
    %v2288 = vld [vmem:[#allocation7 + $0x1e8] sm:$0xff]
    %v2289 = vld [vmem:[#allocation7 + $0x1f0] sm:$0xff]
    %v2290 = vld [vmem:[#allocation7 + $0x1f8] sm:$0xff]
    %v2292 = vlaneseq
    %v2293 = vshrl.u32 %v2292, 7
    %v2294 = vsub.s32 0, %v2293
    %v2295 = vrot.slane %v108, %v2294
    %v2296 = vlaneseq
    %v2297 = vshrl.u32 %v2296, 7
    %v2298 = vsub.s32 1, %v2297
    %v2299 = vrot.slane %v108, %v2298
    %v2366 = vunpack.c.l.b16 %v2227
    %v2367 = vunpack.c.h.b16 %v2227
    %v2368 = vunpack.c.l.b16 %v2228
    %v2369 = vunpack.c.h.b16 %v2228
    %v2370 = vunpack.c.l.b16 %v2229
    %v2371 = vunpack.c.h.b16 %v2229
    %v2372 = vunpack.c.l.b16 %v2230
    %v2373 = vunpack.c.h.b16 %v2230
    %v2374 = vunpack.c.l.b16 %v2231
    %v2375 = vunpack.c.h.b16 %v2231
    %v2376 = vunpack.c.l.b16 %v2232
    %v2377 = vunpack.c.h.b16 %v2232
    %v2378 = vunpack.c.l.b16 %v2233
    %v2379 = vunpack.c.h.b16 %v2233
    %v2380 = vunpack.c.l.b16 %v2234
    %v2381 = vunpack.c.h.b16 %v2234
    %v2382 = vunpack.c.l.b16 %v2235
    %v2383 = vunpack.c.h.b16 %v2235
    %v2384 = vunpack.c.l.b16 %v2236
    %v2385 = vunpack.c.h.b16 %v2236
    %v2386 = vunpack.c.l.b16 %v2237
    %v2387 = vunpack.c.h.b16 %v2237
    %v2388 = vunpack.c.l.b16 %v2238
    %v2389 = vunpack.c.h.b16 %v2238
    %v2390 = vunpack.c.l.b16 %v2239
    %v2391 = vunpack.c.h.b16 %v2239
    %v2392 = vunpack.c.l.b16 %v2240
    %v2393 = vunpack.c.h.b16 %v2240
    %v2394 = vunpack.c.l.b16 %v2241
    %v2395 = vunpack.c.h.b16 %v2241
    %v2396 = vunpack.c.l.b16 %v2242
    %v2397 = vunpack.c.h.b16 %v2242
    %v2398 = vunpack.c.l.b16 %v2243
    %v2399 = vunpack.c.h.b16 %v2243
    %v2400 = vunpack.c.l.b16 %v2244
    %v2401 = vunpack.c.h.b16 %v2244
    %v2402 = vunpack.c.l.b16 %v2245
    %v2403 = vunpack.c.h.b16 %v2245
    %v2404 = vunpack.c.l.b16 %v2246
    %v2405 = vunpack.c.h.b16 %v2246
    %v2406 = vunpack.c.l.b16 %v2247
    %v2407 = vunpack.c.h.b16 %v2247
    %v2408 = vunpack.c.l.b16 %v2248
    %v2409 = vunpack.c.h.b16 %v2248
    %v2410 = vunpack.c.l.b16 %v2249
    %v2411 = vunpack.c.h.b16 %v2249
    %v2412 = vunpack.c.l.b16 %v2250
    %v2413 = vunpack.c.h.b16 %v2250
    %v2414 = vunpack.c.l.b16 %v2251
    %v2415 = vunpack.c.h.b16 %v2251
    %v2416 = vunpack.c.l.b16 %v2252
    %v2417 = vunpack.c.h.b16 %v2252
    %v2418 = vunpack.c.l.b16 %v2253
    %v2419 = vunpack.c.h.b16 %v2253
    %v2420 = vunpack.c.l.b16 %v2254
    %v2421 = vunpack.c.h.b16 %v2254
    %v2422 = vunpack.c.l.b16 %v2255
    %v2423 = vunpack.c.h.b16 %v2255
    %v2424 = vunpack.c.l.b16 %v2256
    %v2425 = vunpack.c.h.b16 %v2256
    %v2426 = vunpack.c.l.b16 %v2257
    %v2427 = vunpack.c.h.b16 %v2257
    %v2428 = vunpack.c.l.b16 %v2258
    %v2429 = vunpack.c.h.b16 %v2258
    %v2430 = vunpack.c.l.b16 %v2259
    %v2431 = vunpack.c.h.b16 %v2259
    %v2432 = vunpack.c.l.b16 %v2260
    %v2433 = vunpack.c.h.b16 %v2260
    %v2434 = vunpack.c.l.b16 %v2261
    %v2435 = vunpack.c.h.b16 %v2261
    %v2436 = vunpack.c.l.b16 %v2262
    %v2437 = vunpack.c.h.b16 %v2262
    %v2438 = vunpack.c.l.b16 %v2263
    %v2439 = vunpack.c.h.b16 %v2263
    %v2440 = vunpack.c.l.b16 %v2264
    %v2441 = vunpack.c.h.b16 %v2264
    %v2442 = vunpack.c.l.b16 %v2265
    %v2443 = vunpack.c.h.b16 %v2265
    %v2444 = vunpack.c.l.b16 %v2266
    %v2445 = vunpack.c.h.b16 %v2266
    %v2446 = vunpack.c.l.b16 %v2267
    %v2447 = vunpack.c.h.b16 %v2267
    %v2448 = vunpack.c.l.b16 %v2268
    %v2449 = vunpack.c.h.b16 %v2268
    %v2450 = vunpack.c.l.b16 %v2269
    %v2451 = vunpack.c.h.b16 %v2269
    %v2452 = vunpack.c.l.b16 %v2270
    %v2453 = vunpack.c.h.b16 %v2270
    %v2454 = vunpack.c.l.b16 %v2271
    %v2455 = vunpack.c.h.b16 %v2271
    %v2456 = vunpack.c.l.b16 %v2272
    %v2457 = vunpack.c.h.b16 %v2272
    %v2458 = vunpack.c.l.b16 %v2273
    %v2459 = vunpack.c.h.b16 %v2273
    %v2460 = vunpack.c.l.b16 %v2274
    %v2461 = vunpack.c.h.b16 %v2274
    %v2462 = vunpack.c.l.b16 %v2275
    %v2463 = vunpack.c.h.b16 %v2275
    %v2464 = vunpack.c.l.b16 %v2276
    %v2465 = vunpack.c.h.b16 %v2276
    %v2466 = vunpack.c.l.b16 %v2277
    %v2467 = vunpack.c.h.b16 %v2277
    %v2468 = vunpack.c.l.b16 %v2278
    %v2469 = vunpack.c.h.b16 %v2278
    %v2470 = vunpack.c.l.b16 %v2279
    %v2471 = vunpack.c.h.b16 %v2279
    %v2472 = vunpack.c.l.b16 %v2280
    %v2473 = vunpack.c.h.b16 %v2280
    %v2474 = vunpack.c.l.b16 %v2281
    %v2475 = vunpack.c.h.b16 %v2281
    %v2476 = vunpack.c.l.b16 %v2282
    %v2477 = vunpack.c.h.b16 %v2282
    %v2478 = vunpack.c.l.b16 %v2283
    %v2479 = vunpack.c.h.b16 %v2283
    %v2480 = vunpack.c.l.b16 %v2284
    %v2481 = vunpack.c.h.b16 %v2284
    %v2482 = vunpack.c.l.b16 %v2285
    %v2483 = vunpack.c.h.b16 %v2285
    %v2484 = vunpack.c.l.b16 %v2286
    %v2485 = vunpack.c.h.b16 %v2286
    %v2486 = vunpack.c.l.b16 %v2287
    %v2487 = vunpack.c.h.b16 %v2287
    %v2488 = vunpack.c.l.b16 %v2288
    %v2489 = vunpack.c.h.b16 %v2288
    %v2490 = vunpack.c.l.b16 %v2289
    %v2491 = vunpack.c.h.b16 %v2289
    %v2492 = vunpack.c.l.b16 %v2290
    %v2493 = vunpack.c.h.b16 %v2290
    %v2494 = vpack.c.b16 %v2368, %v2366
    %v2495 = vpack.c.b16 %v2369, %v2367
    %v2496 = vpack.c.b16 %v2372, %v2370
    %v2497 = vpack.c.b16 %v2373, %v2371
    %v2498 = vpack.c.b16 %v2376, %v2374
    %v2499 = vpack.c.b16 %v2377, %v2375
    %v2500 = vpack.c.b16 %v2380, %v2378
    %v2501 = vpack.c.b16 %v2381, %v2379
    %v2502 = vpack.c.b16 %v2384, %v2382
    %v2503 = vpack.c.b16 %v2385, %v2383
    %v2504 = vpack.c.b16 %v2388, %v2386
    %v2505 = vpack.c.b16 %v2389, %v2387
    %v2506 = vpack.c.b16 %v2392, %v2390
    %v2507 = vpack.c.b16 %v2393, %v2391
    %v2508 = vpack.c.b16 %v2396, %v2394
    %v2509 = vpack.c.b16 %v2397, %v2395
    %v2510 = vpack.c.b16 %v2400, %v2398
    %v2511 = vpack.c.b16 %v2401, %v2399
    %v2512 = vpack.c.b16 %v2404, %v2402
    %v2513 = vpack.c.b16 %v2405, %v2403
    %v2514 = vpack.c.b16 %v2408, %v2406
    %v2515 = vpack.c.b16 %v2409, %v2407
    %v2516 = vpack.c.b16 %v2412, %v2410
    %v2517 = vpack.c.b16 %v2413, %v2411
    %v2518 = vpack.c.b16 %v2416, %v2414
    %v2519 = vpack.c.b16 %v2417, %v2415
    %v2520 = vpack.c.b16 %v2420, %v2418
    %v2521 = vpack.c.b16 %v2421, %v2419
    %v2522 = vpack.c.b16 %v2424, %v2422
    %v2523 = vpack.c.b16 %v2425, %v2423
    %v2524 = vpack.c.b16 %v2428, %v2426
    %v2525 = vpack.c.b16 %v2429, %v2427
    %v2526 = vpack.c.b16 %v2432, %v2430
    %v2527 = vpack.c.b16 %v2433, %v2431
    %v2528 = vpack.c.b16 %v2436, %v2434
    %v2529 = vpack.c.b16 %v2437, %v2435
    %v2530 = vpack.c.b16 %v2440, %v2438
    %v2531 = vpack.c.b16 %v2441, %v2439
    %v2532 = vpack.c.b16 %v2444, %v2442
    %v2533 = vpack.c.b16 %v2445, %v2443
    %v2534 = vpack.c.b16 %v2448, %v2446
    %v2535 = vpack.c.b16 %v2449, %v2447
    %v2536 = vpack.c.b16 %v2452, %v2450
    %v2537 = vpack.c.b16 %v2453, %v2451
    %v2538 = vpack.c.b16 %v2456, %v2454
    %v2539 = vpack.c.b16 %v2457, %v2455
    %v2540 = vpack.c.b16 %v2460, %v2458
    %v2541 = vpack.c.b16 %v2461, %v2459
    %v2542 = vpack.c.b16 %v2464, %v2462
    %v2543 = vpack.c.b16 %v2465, %v2463
    %v2544 = vpack.c.b16 %v2468, %v2466
    %v2545 = vpack.c.b16 %v2469, %v2467
    %v2546 = vpack.c.b16 %v2472, %v2470
    %v2547 = vpack.c.b16 %v2473, %v2471
    %v2548 = vpack.c.b16 %v2476, %v2474
    %v2549 = vpack.c.b16 %v2477, %v2475
    %v2550 = vpack.c.b16 %v2480, %v2478
    %v2551 = vpack.c.b16 %v2481, %v2479
    %v2552 = vpack.c.b16 %v2484, %v2482
    %v2553 = vpack.c.b16 %v2485, %v2483
    %v2554 = vpack.c.b16 %v2488, %v2486
    %v2555 = vpack.c.b16 %v2489, %v2487
    %v2556 = vpack.c.b16 %v2492, %v2490
    %v2557 = vpack.c.b16 %v2493, %v2491
    %2622 = vmatprep.subr.bf16.mxu0 %v2495
    %2623 = vmatpush1.bf16.msra.mxu0 %v2494
    %2624 = vmatprep.subr.bf16.mxu0 %v2497
    %2625 = vmatpush1.bf16.msra.mxu0 %v2496
    %2626 = vmatprep.subr.bf16.mxu0 %v2499
    %2627 = vmatpush1.bf16.msra.mxu0 %v2498
    %2628 = vmatprep.subr.bf16.mxu0 %v2501
    %2629 = vmatpush1.bf16.msra.mxu0 %v2500
    %2630 = vmatprep.subr.bf16.mxu0 %v2503
    %2631 = vmatpush1.bf16.msra.mxu0 %v2502
    %2632 = vmatprep.subr.bf16.mxu0 %v2505
    %2633 = vmatpush1.bf16.msra.mxu0 %v2504
    %2634 = vmatprep.subr.bf16.mxu0 %v2507
    %2635 = vmatpush1.bf16.msra.mxu0 %v2506
    %2636 = vmatprep.subr.bf16.mxu0 %v2509
    %2637 = vmatpush1.bf16.msra.mxu0 %v2508
    %2638 = vmatprep.subr.bf16.mxu0 %v2511
    %2639 = vmatpush1.bf16.msra.mxu0 %v2510
    %2640 = vmatprep.subr.bf16.mxu0 %v2513
    %2641 = vmatpush1.bf16.msra.mxu0 %v2512
    %2642 = vmatprep.subr.bf16.mxu0 %v2515
    %2643 = vmatpush1.bf16.msra.mxu0 %v2514
    %2644 = vmatprep.subr.bf16.mxu0 %v2517
    %2645 = vmatpush1.bf16.msra.mxu0 %v2516
    %2646 = vmatprep.subr.bf16.mxu0 %v2519
    %2647 = vmatpush1.bf16.msra.mxu0 %v2518
    %2648 = vmatprep.subr.bf16.mxu0 %v2521
    %2649 = vmatpush1.bf16.msra.mxu0 %v2520
    %2650 = vmatprep.subr.bf16.mxu0 %v2523
    %2651 = vmatpush1.bf16.msra.mxu0 %v2522
    %2652 = vmatprep.subr.bf16.mxu0 %v2525
    %2653 = vmatpush1.bf16.msra.mxu0 %v2524
    %2654 = vmatprep.mubr.bf16.mxu0 %v2224
    %2655 = vmatmul.mubr.bf16.gmra.mrb[0].mxu0 %v2223
    %v2656 = vpop.f32.mrb[0].mxu0
    %v2657 = vadd.f32 %v2295, %v2656
    %v2658 = vpop.f32.mrb[0].mxu0
    %v2659 = vadd.f32 %v2299, %v2658
    %v2660 = vpop.f32.mrb[0].mxu0
    %v2661 = vadd.f32 %v2295, %v2660
    %v2662 = vpop.f32.mrb[0].mxu0
    %v2663 = vadd.f32 %v2299, %v2662
    %2664 = vdwg.mxu0
    %2665 = vmatprep.subr.bf16.mxu0 %v2527
    %2666 = vmatpush1.bf16.msra.mxu0 %v2526
    %2667 = vmatprep.subr.bf16.mxu0 %v2529
    %2668 = vmatpush1.bf16.msra.mxu0 %v2528
    %2669 = vmatprep.subr.bf16.mxu0 %v2531
    %2670 = vmatpush1.bf16.msra.mxu0 %v2530
    %2671 = vmatprep.subr.bf16.mxu0 %v2533
    %2672 = vmatpush1.bf16.msra.mxu0 %v2532
    %2673 = vmatprep.subr.bf16.mxu0 %v2535
    %2674 = vmatpush1.bf16.msra.mxu0 %v2534
    %2675 = vmatprep.subr.bf16.mxu0 %v2537
    %2676 = vmatpush1.bf16.msra.mxu0 %v2536
    %2677 = vmatprep.subr.bf16.mxu0 %v2539
    %2678 = vmatpush1.bf16.msra.mxu0 %v2538
    %2679 = vmatprep.subr.bf16.mxu0 %v2541
    %2680 = vmatpush1.bf16.msra.mxu0 %v2540
    %2681 = vmatprep.subr.bf16.mxu0 %v2543
    %2682 = vmatpush1.bf16.msra.mxu0 %v2542
    %2683 = vmatprep.subr.bf16.mxu0 %v2545
    %2684 = vmatpush1.bf16.msra.mxu0 %v2544
    %2685 = vmatprep.subr.bf16.mxu0 %v2547
    %2686 = vmatpush1.bf16.msra.mxu0 %v2546
    %2687 = vmatprep.subr.bf16.mxu0 %v2549
    %2688 = vmatpush1.bf16.msra.mxu0 %v2548
    %2689 = vmatprep.subr.bf16.mxu0 %v2551
    %2690 = vmatpush1.bf16.msra.mxu0 %v2550
    %2691 = vmatprep.subr.bf16.mxu0 %v2553
    %2692 = vmatpush1.bf16.msra.mxu0 %v2552
    %2693 = vmatprep.subr.bf16.mxu0 %v2555
    %2694 = vmatpush1.bf16.msra.mxu0 %v2554
    %2695 = vmatprep.subr.bf16.mxu0 %v2557
    %2696 = vmatpush1.bf16.msra.mxu0 %v2556
    %2697 = vmatprep.mubr.bf16.mxu0 %v2226
    %2698 = vmatmul.mubr.bf16.gmra.mrb[0].mxu0 %v2225
    %v2699 = vpop.f32.mrb[0].mxu0
    %v2700 = vadd.f32 %v2657, %v2699
    %v2701 = vpop.f32.mrb[0].mxu0
    %v2702 = vadd.f32 %v2659, %v2701
    %v2703 = vpop.f32.mrb[0].mxu0
    %v2704 = vadd.f32 %v2661, %v2703
    %v2705 = vpop.f32.mrb[0].mxu0
    %v2706 = vadd.f32 %v2663, %v2705
    %2707 = vdwg.mxu0
    %v2708 = vmax.f32 %v2700, 0.0
    %v2709 = vmax.f32 %v2702, 0.0
    %v2710 = vmax.f32 %v2704, 0.0
    %v2711 = vmax.f32 %v2706, 0.0
    %v2712 = vld [vmem:[%s9] sm:$0xff]
    %v2713 = vld [vmem:[%s9 + $0x8] sm:$0xff]
    %v2714 = vld [vmem:[%s9 + $0x10] sm:$0xff]
    %v2715 = vld [vmem:[%s9 + $0x18] sm:$0xff]
    %v2716 = vld [vmem:[%s9 + $0x20] sm:$0xff]
    %v2717 = vld [vmem:[%s9 + $0x28] sm:$0xff]
    %v2718 = vld [vmem:[%s9 + $0x30] sm:$0xff]
    %v2719 = vld [vmem:[%s9 + $0x38] sm:$0xff]
    %v2720 = vld [vmem:[%s9 + $0x40] sm:$0xff]
    %v2721 = vld [vmem:[%s9 + $0x48] sm:$0xff]
    %v2722 = vld [vmem:[%s9 + $0x50] sm:$0xff]
    %v2723 = vld [vmem:[%s9 + $0x58] sm:$0xff]
    %v2724 = vld [vmem:[%s9 + $0x60] sm:$0xff]
    %v2725 = vld [vmem:[%s9 + $0x68] sm:$0xff]
    %v2726 = vld [vmem:[%s9 + $0x70] sm:$0xff]
    %v2727 = vld [vmem:[%s9 + $0x78] sm:$0xff]
    %v2728 = vld [vmem:[%s9 + $0x80] sm:$0xff]
    %v2729 = vld [vmem:[%s9 + $0x88] sm:$0xff]
    %v2730 = vld [vmem:[%s9 + $0x90] sm:$0xff]
    %v2731 = vld [vmem:[%s9 + $0x98] sm:$0xff]
    %v2732 = vld [vmem:[%s9 + $0xa0] sm:$0xff]
    %v2733 = vld [vmem:[%s9 + $0xa8] sm:$0xff]
    %v2734 = vld [vmem:[%s9 + $0xb0] sm:$0xff]
    %v2735 = vld [vmem:[%s9 + $0xb8] sm:$0xff]
    %v2736 = vld [vmem:[%s9 + $0xc0] sm:$0xff]
    %v2737 = vld [vmem:[%s9 + $0xc8] sm:$0xff]
    %v2738 = vld [vmem:[%s9 + $0xd0] sm:$0xff]
    %v2739 = vld [vmem:[%s9 + $0xd8] sm:$0xff]
    %v2740 = vld [vmem:[%s9 + $0xe0] sm:$0xff]
    %v2741 = vld [vmem:[%s9 + $0xe8] sm:$0xff]
    %v2742 = vld [vmem:[%s9 + $0xf0] sm:$0xff]
    %v2743 = vld [vmem:[%s9 + $0xf8] sm:$0xff]
    %2744 = vmatprep.subr.mxu0 0.0
    %2745 = vmatpush1.msra.mxu0 %v2712
    %2746 = vmatprep.subr.mxu0 0.0
    %2747 = vmatpush1.msra.mxu0 %v2713
    %2748 = vmatprep.subr.mxu0 0.0
    %2749 = vmatpush1.msra.mxu0 %v2714
    %2750 = vmatprep.subr.mxu0 0.0
    %2751 = vmatpush1.msra.mxu0 %v2715
    %2752 = vmatprep.subr.mxu0 0.0
    %2753 = vmatpush1.msra.mxu0 %v2716
    %2754 = vmatprep.subr.mxu0 0.0
    %2755 = vmatpush1.msra.mxu0 %v2717
    %2756 = vmatprep.subr.mxu0 0.0
    %2757 = vmatpush1.msra.mxu0 %v2718
    %2758 = vmatprep.subr.mxu0 0.0
    %2759 = vmatpush1.msra.mxu0 %v2719
    %2760 = vmatprep.subr.mxu0 0.0
    %2761 = vmatpush1.msra.mxu0 %v2720
    %2762 = vmatprep.subr.mxu0 0.0
    %2763 = vmatpush1.msra.mxu0 %v2721
    %2764 = vmatprep.subr.mxu0 0.0
    %2765 = vmatpush1.msra.mxu0 %v2722
    %2766 = vmatprep.subr.mxu0 0.0
    %2767 = vmatpush1.msra.mxu0 %v2723
    %2768 = vmatprep.subr.mxu0 0.0
    %2769 = vmatpush1.msra.mxu0 %v2724
    %2770 = vmatprep.subr.mxu0 0.0
    %2771 = vmatpush1.msra.mxu0 %v2725
    %2772 = vmatprep.subr.mxu0 0.0
    %2773 = vmatpush1.msra.mxu0 %v2726
    %2774 = vmatprep.subr.mxu0 0.0
    %2775 = vmatpush1.msra.mxu0 %v2727
    %2776 = vmatprep.subr.mxu0 0.0
    %2777 = vmatpush1.msra.mxu0 %v2728
    %2778 = vmatprep.subr.mxu0 0.0
    %2779 = vmatpush1.msra.mxu0 %v2729
    %2780 = vmatprep.subr.mxu0 0.0
    %2781 = vmatpush1.msra.mxu0 %v2730
    %2782 = vmatprep.subr.mxu0 0.0
    %2783 = vmatpush1.msra.mxu0 %v2731
    %2784 = vmatprep.subr.mxu0 0.0
    %2785 = vmatpush1.msra.mxu0 %v2732
    %2786 = vmatprep.subr.mxu0 0.0
    %2787 = vmatpush1.msra.mxu0 %v2733
    %2788 = vmatprep.subr.mxu0 0.0
    %2789 = vmatpush1.msra.mxu0 %v2734
    %2790 = vmatprep.subr.mxu0 0.0
    %2791 = vmatpush1.msra.mxu0 %v2735
    %2792 = vmatprep.subr.mxu0 0.0
    %2793 = vmatpush1.msra.mxu0 %v2736
    %2794 = vmatprep.subr.mxu0 0.0
    %2795 = vmatpush1.msra.mxu0 %v2737
    %2796 = vmatprep.subr.mxu0 0.0
    %2797 = vmatpush1.msra.mxu0 %v2738
    %2798 = vmatprep.subr.mxu0 0.0
    %2799 = vmatpush1.msra.mxu0 %v2739
    %2800 = vmatprep.subr.mxu0 0.0
    %2801 = vmatpush1.msra.mxu0 %v2740
    %2802 = vmatprep.subr.mxu0 0.0
    %2803 = vmatpush1.msra.mxu0 %v2741
    %2804 = vmatprep.subr.mxu0 0.0
    %2805 = vmatpush1.msra.mxu0 %v2742
    %2806 = vmatprep.subr.mxu0 0.0
    %2807 = vmatpush1.msra.mxu0 %v2743
    %2808 = vmatprep.mubr.f32.mxu0 %v2709
    %2809 = vmatmul.mubr.f32.gmra.mrb[0].mxu0 %v2708
    %v2810 = vpop.f32.mrb[0].mxu0
    %v2811 = vadd.f32 %v109, %v2810
    %v2812 = vpop.f32.mrb[0].mxu0
    %2813 = vmatprep.mubr.f32.mxu0 %v2711
    %2814 = vmatmul.mubr.f32.gmra.mrb[0].mxu0 %v2710
    %v2815 = vpop.f32.mrb[0].mxu0
    %v2816 = vadd.f32 %v109, %v2815
    %v2817 = vpop.f32.mrb[0].mxu0
    %2818 = vdwg.mxu0
    %v2819 = vmul.f32 %v2811, 1.442695
    %v2820 = vpow.pop %v2819
    %v2821 = vmul.f32 %v2816, 1.442695
    %v2822 = vpow.pop %v2821
    %v2823 = vlaneseq
    %v2824 = vand.u32 %v2823, 127
    %vm2825 = vcmp.eq.s32.totalorder %v2824, 0
    %2827 = vset.pattern.permute.xlu0 0
    %2828 = vperm.xlu0 %2827, %v2820
    %v2829 = vpop.permute.xlu0 %2828
    %2832 = vset.pattern.permute.xlu0 0
    %2833 = vperm.xlu0 %2832, %v2822
    %v2834 = vpop.permute.xlu0 %2833
    %v2836 = vsel %vm2825, %v2829, 0.0
    %v2837 = vsel %vm2825, %v2834, 0.0
    %vm2838 = vcmp.eq.s32.totalorder %v2824, 1
    %v2839 = vsel %vm2838, %v1619, 0.0
    %v2840 = vsel %vm2838, %v1624, 0.0
    %v2841 = vadd.f32 %v2836, %v2839
    %v2842 = vadd.f32 %v2837, %v2840
    %vm2843 = vcmp.eq.s32.totalorder %v2824, 2
    %v2844 = vsel %vm2843, %v1648, 0.0
    %v2845 = vsel %vm2843, %v1653, 0.0
    %v2846 = vadd.f32 %v2841, %v2844
    %v2847 = vadd.f32 %v2842, %v2845
    %vm2848 = vcmp.eq.s32.totalorder %v2824, 3
    %v2849 = vsel %vm2848, %v1677, 0.0
    %v2850 = vsel %vm2848, %v1682, 0.0
    %v2851 = vadd.f32 %v2846, %v2849
    %v2852 = vadd.f32 %v2847, %v2850
    %vm2853 = vcmask 64512
    %2854 = vst.msk [vmem:[%s10] sm:$0xff] %vm2853, %v2851
    %2855 = vst.msk [vmem:[%s10 + $0x8] sm:$0xff] %vm2853, %v2852
    // Predicated region
    $region58: #{tpu_custom_call.1} parent=1 // pred_check
      _
    $region59: #{tpu_custom_call.1} parent=1 // pred_check_branch
      %2857 = sbr.rel (0) target = $region61
    $region60: #{tpu_custom_call.1} parent=1 // pred_region
      _
    $region61: #{tpu_custom_call.1} parent=1 // pred_fallthru
      _
    // Predicated region
    $region62: #{tpu_custom_call.1} parent=1 // pred_check
      _
    $region63: #{tpu_custom_call.1} parent=1 // pred_check_branch
      %2859 = sbr.rel (0) target = $region65
    $region64: #{tpu_custom_call.1} parent=1 // pred_region
      _
    $region65: #{tpu_custom_call.1} parent=1 // pred_fallthru
      _
    %2860 = vsyncpa [#allocation3], 1
    %2861 = vsyncpa [#allocation5], 1
    %2862 = vsyncpa [#allocation8], 1

</llo_original>
